<compile_context>
chip_gen: v7x
topology: tpu7x:2x2x1
jax: 0.10.0
libtpu: 0.0.40
codegen_flags: <defaults>
</compile_context>

<pallas_src>
import jax
import jax.numpy as jnp
from jax.experimental import pallas as pl
from jax.experimental.pallas import tpu as pltpu

NUM_CLASSES = 9
PAD_CLASSES = 128          # lane-dense logits block; sliced to 9 in the wrapper
C1, C2 = 32, 64


# ----------------------- wrapper-side weight transforms ----------------------

def _build_conv1_toeplitz(conv1_w, W):
    """conv1_w: (C1, 1, 3, 3) OIHW -> (3, W+2, W*C1) f32.

    T[kh] maps one zero-padded input row (length W+2) to a conv1 output row
    whose columns are (w, c), c minor, with all even w first then all odd w
    (so the width-direction 2x2 pool is max(first half, second half) of lanes).
    """
    C = conv1_w.shape[0]
    w_arr = jnp.arange(W)
    half = (W // 2) * C
    col_base = jnp.where(w_arr % 2 == 0, (w_arr // 2) * C, half + (w_arr // 2) * C)
    cols = col_base[:, None] + jnp.arange(C)[None, :]            # (W, C)
    mats = []
    for kh in range(3):
        T = jnp.zeros((W + 2, W * C), jnp.float32)
        for kw in range(3):
            rows = (w_arr + kw)[:, None]                         # (W, 1)
            vals = jnp.broadcast_to(conv1_w[:, 0, kh, kw][None, :], (W, C))
            T = T.at[rows, cols].add(vals)
        mats.append(T)
    return jnp.stack(mats)


def _build_conv2_toeplitz(conv2_w, W2):
    """conv2_w: (C2, C1, 3, 3) OIHW -> (3, W2*C1, W2*C2) f32.

    T[kh] maps one pooled row (columns (w, ci), ci minor) to a conv2 output
    row (columns (w, c2), c2 minor); width zero-padding is folded into T.
    """
    c2, c1 = conv2_w.shape[0], conv2_w.shape[1]
    w_arr = jnp.arange(W2)
    mats = []
    for kh in range(3):
        T = jnp.zeros((W2 * c1, W2 * c2), jnp.float32)
        for kw in range(3):
            wq = w_arr + kw - 1                                  # input w tap
            valid = (wq >= 0) & (wq < W2)
            rows = (jnp.clip(wq, 0, W2 - 1) * c1)[:, None, None] \
                + jnp.arange(c1)[None, :, None]                  # (W2, C1, 1)
            cols = (w_arr * c2)[:, None, None] \
                + jnp.arange(c2)[None, None, :]                  # (W2, 1, C2)
            blk = conv2_w[:, :, kh, kw].T                        # (C1, C2)
            vals = jnp.where(valid[:, None, None], blk[None, :, :], 0.0)
            T = T.at[rows, cols].add(vals)
        mats.append(T)
    return jnp.stack(mats)


# --------------------------------- kernel ------------------------------------

def _fused_cnn_kernel(lhs1_ref, w1_ref, b1_ref, w2_ref, b2_ref, wh_ref,
                      fcb_ref, o_ref, y2p_ref):
    # Per grid step (one batch tile of B_TILE images):
    #   lhs1_ref : (1, 2*B*H2, 3*(W+2))  pre-staged conv1 LHS (even rows block,
    #                                    then odd rows block; b-major, r-minor)
    #   w1_ref   : (3*(W+2), W*C1)       conv1 Toeplitz mats stacked along K
    #   w2_ref   : (3*W2*C1, W2*C2)      conv2 Toeplitz mats stacked along K
    #   wh_ref   : (W2*C2, 128)          avg-pool folded fc weight, lane-padded
    #   y2p_ref  : VMEM scratch (B, H2+2, W2*C1) for per-image h-zero-padding
    f32 = jnp.float32
    dot = lambda a, b: jnp.dot(a, b, preferred_element_type=f32)

    bt, h2p2, wc = y2p_ref.shape
    h2 = h2p2 - 2
    m1 = bt * h2                                   # rows per even/odd block

    # --- Conv1 (1->32): ONE fused-K matmul for all even+odd rows of the tile.
    y1 = dot(lhs1_ref[0], w1_ref[...])             # (2*m1, W*C1)
    # ReLU + 2x2 max-pool: h-pool = even vs odd row blocks (sublane-aligned
    # slices), w-pool = lane halves (multiples of 128 lanes, shuffle-free).
    hp = jnp.maximum(jnp.maximum(y1[0:m1], y1[m1:2 * m1]) + b1_ref[...], 0.0)
    half = hp.shape[1] // 2
    y2 = jnp.maximum(hp[:, :half], hp[:, half:])   # (m1, W2*C1)

    # --- Conv2 (32->64): per-image h-zero-padding in VMEM scratch, one matmul.
    # Pad rows are rewritten every step (cheap) so the kernel stays correct
    # even when the "parallel" grid axis is split across TensorCores.
    zr = jnp.zeros((bt, 1, wc), f32)
    y2p_ref[:, 0:1, :] = zr
    y2p_ref[:, h2 + 1:h2 + 2, :] = zr
    y2p_ref[:, 1:h2 + 1, :] = y2.reshape(bt, h2, wc)
    lhs2 = jnp.concatenate(
        [y2p_ref[:, 0:h2, :].reshape(m1, wc),
         y2p_ref[:, 1:h2 + 1, :].reshape(m1, wc),
         y2p_ref[:, 2:h2 + 2, :].reshape(m1, wc)], axis=-1)   # (m1, 3*W2*C1)
    y3 = jnp.maximum(dot(lhs2, w2_ref[...]) + b2_ref[...], 0.0)  # (m1, W2*C2)

    # --- Global avg-pool (h via per-image row sum, w folded into wh) + Linear.
    pooled = jnp.sum(y3.reshape(bt, h2, y3.shape[1]), axis=1)    # (bt, W2*C2)
    o_ref[0] = (dot(pooled, wh_ref[...]) + fcb_ref[...]).astype(o_ref.dtype)


# ------------------------------- forward pass --------------------------------

def _choose_b_tile(n):
    # Target M ~ 128-256 per matmul (B_TILE=16 -> conv1 M=256, conv2 M=128),
    # but keep >= 2 grid steps when N >= 2 so v7x's two TensorCores split work.
    bt = max(1, min(16, n))
    if n > 1 and -(-n // bt) < 2:
        bt = -(-n // 2)
    return bt


@jax.jit
def simple_cnn_forward(x_nchw, params):
    N, Cin, H, W = x_nchw.shape
    assert Cin == 1 and H % 2 == 0 and W % 2 == 0
    H2, W2 = H // 2, W // 2
    KW = 3 * (W + 2)                                # fused-K width of conv1 LHS

    bt = _choose_b_tile(N)
    G = -(-N // bt)
    n_pad = G * bt

    x = x_nchw[:, 0, :, :].astype(jnp.float32)                   # (N, H, W)
    if n_pad != N:
        x = jnp.pad(x, ((0, n_pad - N), (0, 0), (0, 0)))
    xpad = jnp.pad(x, ((0, 0), (1, 1), (1, 1)))                  # (n_pad, H+2, W+2)

    # Pre-staged conv1 LHS: for each output row, its 3 padded input rows,
    # concatenated along K; even output rows block then odd rows block.
    r = jnp.arange(H2)
    rows_e = jnp.stack([2 * r, 2 * r + 1, 2 * r + 2], axis=-1)   # (H2, 3)
    lhs_e = xpad[:, rows_e, :].reshape(n_pad, H2, KW)
    lhs_o = xpad[:, rows_e + 1, :].reshape(n_pad, H2, KW)
    lhs1 = jnp.concatenate([lhs_e.reshape(G, bt * H2, KW),
                            lhs_o.reshape(G, bt * H2, KW)], axis=1)
    # lhs1: (G, 2*bt*H2, 3*(W+2))

    # Constant weight transforms (hoisted/folded by jit).
    w1m = _build_conv1_toeplitz(params["conv1_w"], W).reshape(KW, W * C1)
    b1t = jnp.tile(params["conv1_b"], W).reshape(1, W * C1)
    w2m = _build_conv2_toeplitz(params["conv2_w"], W2).reshape(3 * W2 * C1, W2 * C2)
    b2t = jnp.tile(params["conv2_b"], W2).reshape(1, W2 * C2)
    wh = jnp.tile(params["fc_w"].T, (W2, 1)) / float(H2 * W2)    # (W2*C2, classes)
    wh = jnp.pad(wh, ((0, 0), (0, PAD_CLASSES - NUM_CLASSES)))   # lane-dense
    fcb = jnp.pad(params["fc_b"].reshape(1, NUM_CLASSES),
                  ((0, 0), (0, PAD_CLASSES - NUM_CLASSES)))

    out = pl.pallas_call(
        _fused_cnn_kernel,
        out_shape=jax.ShapeDtypeStruct((G, bt, PAD_CLASSES), jnp.float32),
        grid=(G,),
        in_specs=[
            pl.BlockSpec((1, 2 * bt * H2, KW), lambda i: (i, 0, 0)),      # lhs1
            pl.BlockSpec((KW, W * C1), lambda i: (0, 0)),                 # conv1 W
            pl.BlockSpec((1, W * C1), lambda i: (0, 0)),                  # conv1 b
            pl.BlockSpec((3 * W2 * C1, W2 * C2), lambda i: (0, 0)),       # conv2 W
            pl.BlockSpec((1, W2 * C2), lambda i: (0, 0)),                 # conv2 b
            pl.BlockSpec((W2 * C2, PAD_CLASSES), lambda i: (0, 0)),       # head W
            pl.BlockSpec((1, PAD_CLASSES), lambda i: (0, 0)),             # head b
        ],
        out_specs=pl.BlockSpec((1, bt, PAD_CLASSES), lambda i: (i, 0, 0)),
        scratch_shapes=[pltpu.VMEM((bt, H2 + 2, W2 * C1), jnp.float32)],
        compiler_params=pltpu.CompilerParams(
            dimension_semantics=("parallel",),
            vmem_limit_bytes=32 * 1024 * 1024),
    )(lhs1, w1m, b1t, w2m, b2t, wh, fcb)

    return out.reshape(n_pad, PAD_CLASSES)[:N, :NUM_CLASSES]


# ------------------------------ pure-JAX reference ---------------------------

def _ref_forward(x_nchw, params):
    x = jnp.transpose(x_nchw, (0, 2, 3, 1)).astype(jnp.float32)
    dn = ("NHWC", "OIHW", "NHWC")
    y = jax.lax.conv_general_dilated(x, params["conv1_w"], (1, 1), "SAME",
                                     dimension_numbers=dn) + params["conv1_b"]
    y = jnp.maximum(y, 0.0)
    y = jax.lax.reduce_window(y, -jnp.inf, jax.lax.max,
                              (1, 2, 2, 1), (1, 2, 2, 1), "VALID")
    y = jax.lax.conv_general_dilated(y, params["conv2_w"], (1, 1), "SAME",
                                     dimension_numbers=dn) + params["conv2_b"]
    y = jnp.maximum(y, 0.0)
    pooled = jnp.mean(y, axis=(1, 2))
    return pooled @ params["fc_w"].T + params["fc_b"]


def init_params(key):
    ks = jax.random.split(key, 6)
    return {
        "conv1_w": 0.1 * jax.random.normal(ks[0], (C1, 1, 3, 3), jnp.float32),
        "conv1_b": 0.1 * jax.random.normal(ks[1], (C1,), jnp.float32),
        "conv2_w": 0.05 * jax.random.normal(ks[2], (C2, C1, 3, 3), jnp.float32),
        "conv2_b": 0.1 * jax.random.normal(ks[3], (C2,), jnp.float32),
        "fc_w": 0.1 * jax.random.normal(ks[4], (NUM_CLASSES, C2), jnp.float32),
        "fc_b": 0.1 * jax.random.normal(ks[5], (NUM_CLASSES,), jnp.float32),
    }


if __name__ == "__main__":
    key = jax.random.PRNGKey(0)
    k_x, k_p = jax.random.split(key)
    params = init_params(k_p)
    # PyTorch-style NCHW input: batch=2, channels=1, spatial=16x16
    x = jax.random.normal(k_x, (2, 1, 16, 16), jnp.float32)

    out = jax.block_until_ready(simple_cnn_forward(x, params))
    ref = jax.block_until_ready(_ref_forward(x, params))
    assert out.shape == (2, NUM_CLASSES)
    assert jnp.allclose(out, ref, atol=1e-4, rtol=1e-4), (
        float(jnp.max(jnp.abs(out - ref))))
    print("KERNEL_OK")
</pallas_src>

<mosaic_0001>
module attributes {stable_mosaic.version = 11 : i64} {
  func.func private @main(%arg0: i32) attributes {dimension_semantics = [#tpu.dimension_semantics<core_parallel>], iteration_bounds = array<i64: 2>, tpu.core_type = #tpu.core_type<sc_scalar_subcore>, window_params = []} {
    return
  }
}

module attributes {stable_mosaic.version = 11 : i64} {
  func.func private @main(%arg0: i32) attributes {dimension_semantics = [#tpu.dimension_semantics<core_parallel>], iteration_bounds = array<i64: 2>, tpu.core_type = #tpu.core_type<sc_scalar_subcore>, window_params = []} {
    return
  }
}

module attributes {stable_mosaic.version = 11 : i64} {
  func.func @_fused_cnn_kernel(%arg0: i32, %arg1: memref<1x16x54xf32, #tpu.memory_space<vmem>>, %arg2: memref<54x512xf32, #tpu.memory_space<vmem>>, %arg3: memref<1x512xf32, #tpu.memory_space<vmem>>, %arg4: memref<768x512xf32, #tpu.memory_space<vmem>>, %arg5: memref<1x512xf32, #tpu.memory_space<vmem>>, %arg6: memref<512x128xf32, #tpu.memory_space<vmem>>, %arg7: memref<1x128xf32, #tpu.memory_space<vmem>>, %arg8: memref<1x1x128xf32, #tpu.memory_space<vmem>>, %arg9: memref<1x10x256xf32, #tpu.memory_space<vmem>>) attributes {dimension_semantics = [#tpu.dimension_semantics<parallel>], iteration_bounds = array<i64: 2>, scalar_prefetch = 0 : i64, scratch_operands = 1 : i64, tpu.core_type = #tpu.core_type<tc>, window_params = [{transform_indices = @transform_0, window_bounds = array<i64: 1, 16, 54>}, {pipeline_mode = #tpu.pipeline_mode<synchronous>, transform_indices = @transform_1, window_bounds = array<i64: 54, 512>}, {pipeline_mode = #tpu.pipeline_mode<synchronous>, transform_indices = @transform_2, window_bounds = array<i64: 1, 512>}, {pipeline_mode = #tpu.pipeline_mode<synchronous>, transform_indices = @transform_3, window_bounds = array<i64: 768, 512>}, {pipeline_mode = #tpu.pipeline_mode<synchronous>, transform_indices = @transform_4, window_bounds = array<i64: 1, 512>}, {pipeline_mode = #tpu.pipeline_mode<synchronous>, transform_indices = @transform_5, window_bounds = array<i64: 512, 128>}, {pipeline_mode = #tpu.pipeline_mode<synchronous>, transform_indices = @transform_6, window_bounds = array<i64: 1, 128>}, {transform_indices = @transform_7, window_bounds = array<i64: 1, 1, 128>}]} {
    %c0 = arith.constant 0 : index
    %c0_0 = arith.constant 0 : index
    %c0_1 = arith.constant 0 : index
    %0 = vector.load %arg1[%c0, %c0_0, %c0_1] : memref<1x16x54xf32, #tpu.memory_space<vmem>>, vector<1x16x54xf32>
    %1 = vector.shape_cast %0 : vector<1x16x54xf32> to vector<16x54xf32>
    %c0_2 = arith.constant 0 : index
    %c0_3 = arith.constant 0 : index
    %2 = vector.load %arg2[%c0_2, %c0_3] : memref<54x512xf32, #tpu.memory_space<vmem>>, vector<54x512xf32>
    %cst = arith.constant dense<0.000000e+00> : vector<16x512xf32>
    %3 = tpu.matmul %1, %2, %cst {dimension_numbers = #tpu.dot_dimension_numbers<[1], [0], [0], [1], [0, 0, 1, 1], [], []>} : vector<16x54xf32>, vector<54x512xf32>, vector<16x512xf32> -> vector<16x512xf32>
    %4 = vector.extract_strided_slice %3 {offsets = [0, 0], sizes = [8, 512], strides = [1, 1]} : vector<16x512xf32> to vector<8x512xf32>
    %5 = vector.extract_strided_slice %3 {offsets = [8, 0], sizes = [8, 512], strides = [1, 1]} : vector<16x512xf32> to vector<8x512xf32>
    %6 = arith.maximumf %4, %5 : vector<8x512xf32>
    %c0_4 = arith.constant 0 : index
    %c0_5 = arith.constant 0 : index
    %7 = vector.load %arg3[%c0_4, %c0_5] : memref<1x512xf32, #tpu.memory_space<vmem>>, vector<1x512xf32>
    %8 = vector.broadcast %7 : vector<1x512xf32> to vector<8x512xf32>
    %9 = arith.addf %6, %8 : vector<8x512xf32>
    %cst_6 = arith.constant 0.000000e+00 : f32
    %10 = vector.broadcast %cst_6 : f32 to vector<8x512xf32>
    %11 = arith.maximumf %9, %10 : vector<8x512xf32>
    %12 = vector.extract_strided_slice %11 {offsets = [0, 0], sizes = [8, 256], strides = [1, 1]} : vector<8x512xf32> to vector<8x256xf32>
    %13 = vector.extract_strided_slice %11 {offsets = [0, 256], sizes = [8, 256], strides = [1, 1]} : vector<8x512xf32> to vector<8x256xf32>
    %14 = arith.maximumf %12, %13 : vector<8x256xf32>
    %cst_7 = arith.constant 0.000000e+00 : f32
    %15 = vector.broadcast %cst_7 : f32 to vector<1x1x256xf32>
    %c0_8 = arith.constant 0 : index
    %c0_9 = arith.constant 0 : index
    %c0_10 = arith.constant 0 : index
    %16 = vector.load %arg9[%c0_8, %c0_9, %c0_10] : memref<1x10x256xf32, #tpu.memory_space<vmem>>, vector<1x1x256xf32>
    tpu.vector_store %arg9[%c0_8, %c0_9, %c0_10], %15 {strides = array<i32>} : memref<1x10x256xf32, #tpu.memory_space<vmem>>, vector<1x1x256xf32>,
    %c0_11 = arith.constant 0 : index
    %c9 = arith.constant 9 : index
    %c0_12 = arith.constant 0 : index
    %17 = vector.load %arg9[%c0_11, %c9, %c0_12] : memref<1x10x256xf32, #tpu.memory_space<vmem>>, vector<1x1x256xf32>
    tpu.vector_store %arg9[%c0_11, %c9, %c0_12], %15 {strides = array<i32>} : memref<1x10x256xf32, #tpu.memory_space<vmem>>, vector<1x1x256xf32>,
    %18 = vector.shape_cast %14 : vector<8x256xf32> to vector<1x8x256xf32>
    %c0_13 = arith.constant 0 : index
    %c1 = arith.constant 1 : index
    %c0_14 = arith.constant 0 : index
    %19 = vector.load %arg9[%c0_13, %c1, %c0_14] : memref<1x10x256xf32, #tpu.memory_space<vmem>>, vector<1x8x256xf32>
    tpu.vector_store %arg9[%c0_13, %c1, %c0_14], %18 {strides = array<i32>} : memref<1x10x256xf32, #tpu.memory_space<vmem>>, vector<1x8x256xf32>,
    %c0_15 = arith.constant 0 : index
    %c0_16 = arith.constant 0 : index
    %c0_17 = arith.constant 0 : index
    %20 = vector.load %arg9[%c0_15, %c0_16, %c0_17] : memref<1x10x256xf32, #tpu.memory_space<vmem>>, vector<1x8x256xf32>
    %21 = vector.shape_cast %20 : vector<1x8x256xf32> to vector<8x256xf32>
    %c0_18 = arith.constant 0 : index
    %c1_19 = arith.constant 1 : index
    %c0_20 = arith.constant 0 : index
    %22 = vector.load %arg9[%c0_18, %c1_19, %c0_20] : memref<1x10x256xf32, #tpu.memory_space<vmem>>, vector<1x8x256xf32>
    %23 = vector.shape_cast %22 : vector<1x8x256xf32> to vector<8x256xf32>
    %c0_21 = arith.constant 0 : index
    %c2 = arith.constant 2 : index
    %c0_22 = arith.constant 0 : index
    %24 = vector.load %arg9[%c0_21, %c2, %c0_22] : memref<1x10x256xf32, #tpu.memory_space<vmem>>, vector<1x8x256xf32>
    %25 = vector.shape_cast %24 : vector<1x8x256xf32> to vector<8x256xf32>
    %26 = tpu.concatenate %21, %23, %25 in 1 : vector<8x256xf32>, vector<8x256xf32>, vector<8x256xf32> -> vector<8x768xf32>
    %c0_23 = arith.constant 0 : index
    %c0_24 = arith.constant 0 : index
    %27 = vector.load %arg4[%c0_23, %c0_24] : memref<768x512xf32, #tpu.memory_space<vmem>>, vector<768x512xf32>
    %cst_25 = arith.constant dense<0.000000e+00> : vector<8x512xf32>
    %28 = tpu.matmul %26, %27, %cst_25 {dimension_numbers = #tpu.dot_dimension_numbers<[1], [0], [0], [1], [0, 0, 1, 1], [], []>} : vector<8x768xf32>, vector<768x512xf32>, vector<8x512xf32> -> vector<8x512xf32>
    %c0_26 = arith.constant 0 : index
    %c0_27 = arith.constant 0 : index
    %29 = vector.load %arg5[%c0_26, %c0_27] : memref<1x512xf32, #tpu.memory_space<vmem>>, vector<1x512xf32>
    %30 = vector.broadcast %29 : vector<1x512xf32> to vector<8x512xf32>
    %31 = arith.addf %28, %30 : vector<8x512xf32>
    %cst_28 = arith.constant 0.000000e+00 : f32
    %32 = vector.broadcast %cst_28 : f32 to vector<8x512xf32>
    %33 = arith.maximumf %31, %32 : vector<8x512xf32>
    %34 = vector.shape_cast %33 : vector<8x512xf32> to vector<1x8x512xf32>
    %cst_29 = arith.constant dense<0.000000e+00> : vector<1x512xf32>
    %35 = vector.multi_reduction <add>, %34, %cst_29 [1] : vector<1x8x512xf32> to vector<1x512xf32>
    %c0_30 = arith.constant 0 : index
    %c0_31 = arith.constant 0 : index
    %36 = vector.load %arg6[%c0_30, %c0_31] : memref<512x128xf32, #tpu.memory_space<vmem>>, vector<512x128xf32>
    %cst_32 = arith.constant dense<0.000000e+00> : vector<1x128xf32>
    %37 = tpu.matmul %35, %36, %cst_32 {dimension_numbers = #tpu.dot_dimension_numbers<[1], [0], [0], [1], [0, 0, 1, 1], [], []>} : vector<1x512xf32>, vector<512x128xf32>, vector<1x128xf32> -> vector<1x128xf32>
    %c0_33 = arith.constant 0 : index
    %c0_34 = arith.constant 0 : index
    %38 = vector.load %arg7[%c0_33, %c0_34] : memref<1x128xf32, #tpu.memory_space<vmem>>, vector<1x128xf32>
    %39 = arith.addf %37, %38 : vector<1x128xf32>
    %c0_35 = arith.constant 0 : index
    %c0_36 = arith.constant 0 : index
    %c0_37 = arith.constant 0 : index
    %40 = vector.load %arg8[%c0_35, %c0_36, %c0_37] : memref<1x1x128xf32, #tpu.memory_space<vmem>>, vector<1x1x128xf32>
    %41 = vector.shape_cast %40 : vector<1x1x128xf32> to vector<1x128xf32>
    %42 = vector.shape_cast %39 : vector<1x128xf32> to vector<1x1x128xf32>
    tpu.vector_store %arg8[%c0_35, %c0_36, %c0_37], %42 {strides = array<i32>} : memref<1x1x128xf32, #tpu.memory_space<vmem>>, vector<1x1x128xf32>,
    return
  }
  func.func @transform_0(%arg0: i32) -> (i32, i32, i32) {
    %c0_i32 = arith.constant 0 : i32
    %c0_i32_0 = arith.constant 0 : i32
    %c0_i32_1 = arith.constant 0 : i32
    return %arg0, %c0_i32, %c0_i32_0 : i32, i32, i32
  }
  func.func @transform_1(%arg0: i32) -> (i32, i32) {
    %c0_i32 = arith.constant 0 : i32
    %c0_i32_0 = arith.constant 0 : i32
    %c0_i32_1 = arith.constant 0 : i32
    return %c0_i32, %c0_i32_0 : i32, i32
  }
  func.func @transform_2(%arg0: i32) -> (i32, i32) {
    %c0_i32 = arith.constant 0 : i32
    %c0_i32_0 = arith.constant 0 : i32
    %c0_i32_1 = arith.constant 0 : i32
    return %c0_i32, %c0_i32_0 : i32, i32
  }
  func.func @transform_3(%arg0: i32) -> (i32, i32) {
    %c0_i32 = arith.constant 0 : i32
    %c0_i32_0 = arith.constant 0 : i32
    %c0_i32_1 = arith.constant 0 : i32
    return %c0_i32, %c0_i32_0 : i32, i32
  }
  func.func @transform_4(%arg0: i32) -> (i32, i32) {
    %c0_i32 = arith.constant 0 : i32
    %c0_i32_0 = arith.constant 0 : i32
    %c0_i32_1 = arith.constant 0 : i32
    return %c0_i32, %c0_i32_0 : i32, i32
  }
  func.func @transform_5(%arg0: i32) -> (i32, i32) {
    %c0_i32 = arith.constant 0 : i32
    %c0_i32_0 = arith.constant 0 : i32
    %c0_i32_1 = arith.constant 0 : i32
    return %c0_i32, %c0_i32_0 : i32, i32
  }
  func.func @transform_6(%arg0: i32) -> (i32, i32) {
    %c0_i32 = arith.constant 0 : i32
    %c0_i32_0 = arith.constant 0 : i32
    %c0_i32_1 = arith.constant 0 : i32
    return %c0_i32, %c0_i32_0 : i32, i32
  }
  func.func @transform_7(%arg0: i32) -> (i32, i32, i32) {
    %c0_i32 = arith.constant 0 : i32
    %c0_i32_0 = arith.constant 0 : i32
    %c0_i32_1 = arith.constant 0 : i32
    return %arg0, %c0_i32, %c0_i32_0 : i32, i32, i32
  }
}

</mosaic_0001>

<llo_original>
// kernel: tile.19
$region0: #{tile.19}
  %s0 = inlined_call_operand.vmem [shape: f32[16,32], index: 0, kind: input, shape index: {}]
  %s1 = inlined_call_operand.hbm [shape: f32[1,512], index: 1, kind: output, shape index: {}]
  $region1: #{tile.19} parent=0
    #allocation0 [shape = 'u8[2048]{0}', space=vmem, size = 0x800, scoped, tag = 'operand span for operand 1']
    #allocation1 [shape = 's32[1]{0}', space=sflag, size = 0x4, scoped, tag = 'scoped memory for tile.19']
    #allocation2 [shape = 'u8[16384]{0}', space=vmem, size = 0x4000, scoped, tag = 'scoped mem for output reshape']
    %2 = vsyncpa [#allocation1], 0
    %v3 = vld [vmem:[%s0] ss:$4 sm:$0xf]
    %vm4 = vcmask 261120
    %5 = vst.msk [vmem:[#allocation2] ss:$8 sm:$0xf] %vm4, %v3
    %s6 = scalar_lea.vmem %s0, 3
    %v7 = vld [vmem:[%s6] ss:$4 sm:$0xf]
    %8 = vrot.lane.b32.xlu0 %v7, 96
    %v9 = vpop.permute.xlu0 %8
    %vm10 = vcmask 1048320
    %11 = vst.msk [vmem:[#allocation2] ss:$8 sm:$0xf] %vm10, %v9
    %s12 = scalar_lea.vmem %s0, 2
    %v13 = vld [vmem:[%s12] ss:$4 sm:$0xf]
    %14 = vrot.lane.b32.xlu0 %v13, 64
    %v15 = vpop.permute.xlu0 %14
    %vm16 = vcmask 785920
    %17 = vst.msk [vmem:[#allocation2] ss:$8 sm:$0xf] %vm16, %v15
    %s18 = scalar_lea.vmem %s0, 1
    %v19 = vld [vmem:[%s18] ss:$4 sm:$0xf]
    %20 = vrot.lane.b32.xlu0 %v19, 32
    %v21 = vpop.permute.xlu0 %20
    %vm22 = vcmask 523520
    %23 = vst.msk [vmem:[#allocation2] ss:$8 sm:$0xf] %vm22, %v21
    %s25 = sshllo.u32 0, 1
    %v27 = vld [vmem:[#allocation2] sm:%s25]
    %s28 = sshllo.u32 0, 1
    %29 = vst [vmem:[#allocation0] sm:%s28] %v27
    %s30 = scalar_lea.vmem [#allocation2], 8
    %v31 = vld [vmem:[%s30] sm:%s25]
    %s32 = sshllo.u32 0, 1
    %s33 = scalar_lea.vmem [#allocation0], 1
    %34 = vst [vmem:[%s33] sm:%s32] %v31
    %s35 = scalar_lea.vmem [#allocation2], 16
    %v36 = vld [vmem:[%s35] sm:%s25]
    %s37 = sshllo.u32 0, 1
    %s38 = smul.addr 1, 2
    %s39 = scalar_lea.vmem [#allocation0], %s38
    %40 = vst [vmem:[%s39] sm:%s37] %v36
    %s41 = scalar_lea.vmem [#allocation2], 24
    %v42 = vld [vmem:[%s41] sm:%s25]
    %s43 = sshllo.u32 0, 1
    %s44 = smul.addr 1, 3
    %s45 = scalar_lea.vmem [#allocation0], %s44
    %46 = vst [vmem:[%s45] sm:%s43] %v42
    %s48 = ssub.s32 64, 64
    %49 = vsyncadd [#allocation1], %s48
    %s51 = sshll.u32 [#allocation0], 4
    %s52 = int_to_ptr.vmem [resolvable:$true] %s51
    %54 = dma.vmem_to_hbm [thread:$0]  %s52, 64, %s1, [#allocation1]
    %55 = dma.done [#allocation1], 64
    %56 = vsyncpa [#allocation1], 1

// kernel: tile.23
$region0: #{tile.23}
  #allocation0 [shape = 's32[1]{0}', space=sflag, size = 0x4, scoped, tag = 'scoped memory for tile.23']
  %s0 = inlined_call_operand.vmem [shape: f32[64], index: 0, kind: input, shape index: {}]
  %s1 = inlined_call_operand.vmem [shape: f32[8,64], index: 1, kind: output, shape index: {}]
  // Predicated region
  $region2: #{tile.23} parent=0 // pred_check
    _
  $region3: #{tile.23} parent=0 // pred_check_branch
    %3 = sbr.rel (0) target = $region5
  $region4: #{tile.23} parent=0 // pred_region
    _
  $region5: #{tile.23} parent=0 // pred_fallthru
    _
  %v4 = vld [vmem:[%s0] ss:$0 sm:$0xff]
  %5 = vst [vmem:[%s1] sm:$0xff] %v4

// kernel: tile.24
$region0: #{tile.24}
  %s0 = inlined_call_operand.vmem [shape: f32[8,64], index: 0, kind: input, shape index: {}]
  %s1 = inlined_call_operand.hbm [shape: f32[1,512], index: 1, kind: output, shape index: {}]
  $region1: #{tile.24} parent=0
    #allocation0 [shape = 'u8[2048]{0}', space=vmem, size = 0x800, scoped, tag = 'operand span for operand 1']
    #allocation1 [shape = 's32[1]{0}', space=sflag, size = 0x4, scoped, tag = 'scoped memory for tile.24']
    #allocation2 [shape = 'u8[16384]{0}', space=vmem, size = 0x4000, scoped, tag = 'scoped mem for output reshape']
    %2 = vsyncpa [#allocation1], 0
    %v3 = vld [vmem:[%s0] ss:$2 sm:$0xf]
    %vm4 = vcmask 523264
    %5 = vst.msk [vmem:[#allocation2] ss:$8 sm:$0xf] %vm4, %v3
    %s6 = scalar_lea.vmem %s0, 1
    %v7 = vld [vmem:[%s6] ss:$2 sm:$0xf]
    %8 = vrot.lane.b32.xlu0 %v7, 64
    %v9 = vpop.permute.xlu0 %8
    %vm10 = vcmask 1048064
    %11 = vst.msk [vmem:[#allocation2] ss:$8 sm:$0xf] %vm10, %v9
    %s13 = sshllo.u32 0, 1
    %v15 = vld [vmem:[#allocation2] sm:%s13]
    %s16 = sshllo.u32 0, 1
    %17 = vst [vmem:[#allocation0] sm:%s16] %v15
    %s18 = scalar_lea.vmem [#allocation2], 8
    %v19 = vld [vmem:[%s18] sm:%s13]
    %s20 = sshllo.u32 0, 1
    %s21 = scalar_lea.vmem [#allocation0], 1
    %22 = vst [vmem:[%s21] sm:%s20] %v19
    %s23 = scalar_lea.vmem [#allocation2], 16
    %v24 = vld [vmem:[%s23] sm:%s13]
    %s25 = sshllo.u32 0, 1
    %s26 = smul.addr 1, 2
    %s27 = scalar_lea.vmem [#allocation0], %s26
    %28 = vst [vmem:[%s27] sm:%s25] %v24
    %s29 = scalar_lea.vmem [#allocation2], 24
    %v30 = vld [vmem:[%s29] sm:%s13]
    %s31 = sshllo.u32 0, 1
    %s32 = smul.addr 1, 3
    %s33 = scalar_lea.vmem [#allocation0], %s32
    %34 = vst [vmem:[%s33] sm:%s31] %v30
    %s36 = ssub.s32 64, 64
    %37 = vsyncadd [#allocation1], %s36
    %s39 = sshll.u32 [#allocation0], 4
    %s40 = int_to_ptr.vmem [resolvable:$true] %s39
    %42 = dma.vmem_to_hbm [thread:$0]  %s40, 64, %s1, [#allocation1]
    %43 = dma.done [#allocation1], 64
    %44 = vsyncpa [#allocation1], 1

// kernel: simple_cnn_forward.1
$region0: #{simple_cnn_forward.1}
  #allocation0 [shape = 'u32[]', space=smem, size = 0x4, offset = 0x4, fixed_abs, tag = 'smem constant byte address 0x4 - core index']
  #allocation1 [shape = 'u32[144,128]{1,0:T(1,128)}', space=vmem, size = 0x12000, scoped, tag = 'internal scratch']
  #allocation2 [shape = 'f32[1,10,256]{2,1,0:T(8,128)}', space=vmem, size = 0x4000, scoped, tag = 'scratch operand']
  %s0 = inlined_call_operand.vmem [shape: f32[2,16,54], index: 0, kind: input, shape index: {}]
  %s1 = inlined_call_operand.vmem [shape: f32[54,512], index: 1, kind: input, shape index: {}]
  %s2 = inlined_call_operand.vmem [shape: f32[1,512], index: 2, kind: input, shape index: {}]
  %s3 = inlined_call_operand.vmem [shape: f32[768,512], index: 3, kind: input, shape index: {}]
  %s4 = inlined_call_operand.vmem [shape: f32[1,512], index: 4, kind: input, shape index: {}]
  %s5 = inlined_call_operand.vmem [shape: f32[512,128], index: 5, kind: input, shape index: {}]
  %s6 = inlined_call_operand.vmem [shape: f32[1,128], index: 6, kind: input, shape index: {}]
  %s7 = inlined_call_operand.hbm [shape: f32[2,1,128], index: 7, kind: output, shape index: {}]
  %s8 = sld [smem:[#allocation0]]
  $region61: #{simple_cnn_forward.1} parent=0
    _
  %s10 = ssub.s32 1, %s8
  %s11 = scalar_select 0, %s10, %s8
  $region1: #{simple_cnn_forward.1} parent=0
    #allocation3 [shape = 'u8[1024]{0}', space=vmem, size = 0x400, scoped, tag = 'output window, operand 0']
    #allocation4 [shape = 's32[2]{0}', space=sflag, size = 0x8, scoped, tag = 'scoped memory for simple_cnn_forward.1']
    %12 = vsyncpa [#allocation4], 0
    %s13 = scalar_lea.sflag [#allocation4], 1
    %14 = vsyncpa %s13, 0
    loop: start=0, step=1, limit=4
    $region2: #{simple_cnn_forward.1} parent=1 // loop_pre_header
      _
    $region3: #{simple_cnn_forward.1} parent=1 // loop_header
      %s16 = sphi 0, %s20
      %p17 = scmp.ge.s32.totalorder %s16, 4
      %s26 = sphi 0, %s28
      %s29 = sphi 0, %s26
      %s30 = sphi 0, %s29
      %s46 = sphi 0, %s30
      %s50 = sphi 0, %s50
      %s52 = sphi 0, %s50
      %s53 = sphi 0, %s52
      %s67 = sphi 0, %s53
      %s71 = sphi 0, %s71
      %s73 = sphi 0, %s71
      %s74 = sphi 0, %s73
      %s88 = sphi 0, %s74
      %s92 = sphi 0, %s92
      %s94 = sphi 0, %s92
      %s95 = sphi 0, %s94
      %s109 = sphi 0, %s95
      %s113 = sphi 0, %s113
      %s115 = sphi 0, %s113
      %s116 = sphi 0, %s115
      %s130 = sphi 0, %s116
      %s134 = sphi 0, %s134
      %s136 = sphi 0, %s134
      %s137 = sphi 0, %s136
      %s151 = sphi 0, %s137
      %s155 = sphi 0, %s155
      %s157 = sphi 0, %s155
      %s158 = sphi 0, %s157
      %s172 = sphi 0, %s158
      %s178 = sphi 0, %s180
      %s181 = sphi 0, %s178
      %s182 = sphi 0, %s181
      %s198 = sphi 0, %s182
    $region4: #{simple_cnn_forward.1} parent=1 // loop_header_branch
      %19 = sbr.rel (%p17) target = $region8
    $region5: #{simple_cnn_forward.1} parent=1 // loop_body
      %s21 = ssub.s32 %s16, 1
      %s22 = ssub.s32 %s16, 2
      %s23 = sadd.s32 %s16, 1
      %s24 = ssub.s32 %s16, %s23
      %p25 = scmp.eq.s32.totalorder %s24, 0
      %s27 = sadd.s32 %s26, 1
      %s28 = scalar_select %p25, %s26, %s27
      %p31 = pneg %p25
      %p32 = scmp.eq.s32.totalorder %s16, 1
      %p33 = por %p31, %p32
      %p34 = scmp.ne.s32.totalorder %s26, %s29
      %p35 = scmp.eq.s32.totalorder %s16, 0
      %p36 = por %p34, %p35
      %p37 = scmp.ne.s32.totalorder %s26, %s29
      %p38 = scmp.eq.s32.totalorder %s21, 1
      %p39 = por %p37, %p38
      %p40 = scmp.ne.s32.totalorder %s29, %s30
      %p41 = scmp.eq.s32.totalorder %s21, 0
      %p42 = por %p40, %p41
      %p43 = scmp.ne.s32.totalorder %s29, %s30
      %p44 = scmp.eq.s32.totalorder %s22, 1
      %p45 = por %p43, %p44
      %p47 = scmp.ne.s32.totalorder %s30, %s46
      %p48 = scmp.eq.s32.totalorder %s22, 0
      %p49 = por %p47, %p48
      %s51 = sadd.s32 %s50, 1
      %p54 = scmp.eq.s32.totalorder %s16, 1
      %p55 = scmp.ne.s32.totalorder %s50, %s52
      %p56 = scmp.eq.s32.totalorder %s16, 0
      %p57 = por %p55, %p56
      %p58 = scmp.ne.s32.totalorder %s50, %s52
      %p59 = scmp.eq.s32.totalorder %s21, 1
      %p60 = por %p58, %p59
      %p61 = scmp.ne.s32.totalorder %s52, %s53
      %p62 = scmp.eq.s32.totalorder %s21, 0
      %p63 = por %p61, %p62
      %p64 = scmp.ne.s32.totalorder %s52, %s53
      %p65 = scmp.eq.s32.totalorder %s22, 1
      %p66 = por %p64, %p65
      %p68 = scmp.ne.s32.totalorder %s53, %s67
      %p69 = scmp.eq.s32.totalorder %s22, 0
      %p70 = por %p68, %p69
      %s72 = sadd.s32 %s71, 1
      %p75 = scmp.eq.s32.totalorder %s16, 1
      %p76 = scmp.ne.s32.totalorder %s71, %s73
      %p77 = scmp.eq.s32.totalorder %s16, 0
      %p78 = por %p76, %p77
      %p79 = scmp.ne.s32.totalorder %s71, %s73
      %p80 = scmp.eq.s32.totalorder %s21, 1
      %p81 = por %p79, %p80
      %p82 = scmp.ne.s32.totalorder %s73, %s74
      %p83 = scmp.eq.s32.totalorder %s21, 0
      %p84 = por %p82, %p83
      %p85 = scmp.ne.s32.totalorder %s73, %s74
      %p86 = scmp.eq.s32.totalorder %s22, 1
      %p87 = por %p85, %p86
      %p89 = scmp.ne.s32.totalorder %s74, %s88
      %p90 = scmp.eq.s32.totalorder %s22, 0
      %p91 = por %p89, %p90
      %s93 = sadd.s32 %s92, 1
      %p96 = scmp.eq.s32.totalorder %s16, 1
      %p97 = scmp.ne.s32.totalorder %s92, %s94
      %p98 = scmp.eq.s32.totalorder %s16, 0
      %p99 = por %p97, %p98
      %p100 = scmp.ne.s32.totalorder %s92, %s94
      %p101 = scmp.eq.s32.totalorder %s21, 1
      %p102 = por %p100, %p101
      %p103 = scmp.ne.s32.totalorder %s94, %s95
      %p104 = scmp.eq.s32.totalorder %s21, 0
      %p105 = por %p103, %p104
      %p106 = scmp.ne.s32.totalorder %s94, %s95
      %p107 = scmp.eq.s32.totalorder %s22, 1
      %p108 = por %p106, %p107
      %p110 = scmp.ne.s32.totalorder %s95, %s109
      %p111 = scmp.eq.s32.totalorder %s22, 0
      %p112 = por %p110, %p111
      %s114 = sadd.s32 %s113, 1
      %p117 = scmp.eq.s32.totalorder %s16, 1
      %p118 = scmp.ne.s32.totalorder %s113, %s115
      %p119 = scmp.eq.s32.totalorder %s16, 0
      %p120 = por %p118, %p119
      %p121 = scmp.ne.s32.totalorder %s113, %s115
      %p122 = scmp.eq.s32.totalorder %s21, 1
      %p123 = por %p121, %p122
      %p124 = scmp.ne.s32.totalorder %s115, %s116
      %p125 = scmp.eq.s32.totalorder %s21, 0
      %p126 = por %p124, %p125
      %p127 = scmp.ne.s32.totalorder %s115, %s116
      %p128 = scmp.eq.s32.totalorder %s22, 1
      %p129 = por %p127, %p128
      %p131 = scmp.ne.s32.totalorder %s116, %s130
      %p132 = scmp.eq.s32.totalorder %s22, 0
      %p133 = por %p131, %p132
      %s135 = sadd.s32 %s134, 1
      %p138 = scmp.eq.s32.totalorder %s16, 1
      %p139 = scmp.ne.s32.totalorder %s134, %s136
      %p140 = scmp.eq.s32.totalorder %s16, 0
      %p141 = por %p139, %p140
      %p142 = scmp.ne.s32.totalorder %s134, %s136
      %p143 = scmp.eq.s32.totalorder %s21, 1
      %p144 = por %p142, %p143
      %p145 = scmp.ne.s32.totalorder %s136, %s137
      %p146 = scmp.eq.s32.totalorder %s21, 0
      %p147 = por %p145, %p146
      %p148 = scmp.ne.s32.totalorder %s136, %s137
      %p149 = scmp.eq.s32.totalorder %s22, 1
      %p150 = por %p148, %p149
      %p152 = scmp.ne.s32.totalorder %s137, %s151
      %p153 = scmp.eq.s32.totalorder %s22, 0
      %p154 = por %p152, %p153
      %s156 = sadd.s32 %s155, 1
      %p159 = scmp.eq.s32.totalorder %s16, 1
      %p160 = scmp.ne.s32.totalorder %s155, %s157
      %p161 = scmp.eq.s32.totalorder %s16, 0
      %p162 = por %p160, %p161
      %p163 = scmp.ne.s32.totalorder %s155, %s157
      %p164 = scmp.eq.s32.totalorder %s21, 1
      %p165 = por %p163, %p164
      %p166 = scmp.ne.s32.totalorder %s157, %s158
      %p167 = scmp.eq.s32.totalorder %s21, 0
      %p168 = por %p166, %p167
      %p169 = scmp.ne.s32.totalorder %s157, %s158
      %p170 = scmp.eq.s32.totalorder %s22, 1
      %p171 = por %p169, %p170
      %p173 = scmp.ne.s32.totalorder %s158, %s172
      %p174 = scmp.eq.s32.totalorder %s22, 0
      %p175 = por %p173, %p174
      %s176 = ssub.s32 %s16, %s23
      %p177 = scmp.eq.s32.totalorder %s176, 0
      %s179 = sadd.s32 %s178, 1
      %s180 = scalar_select %p177, %s178, %s179
      %p183 = pneg %p177
      %p184 = scmp.eq.s32.totalorder %s16, 1
      %p185 = por %p183, %p184
      %p186 = scmp.ne.s32.totalorder %s178, %s181
      %p187 = scmp.eq.s32.totalorder %s16, 0
      %p188 = por %p186, %p187
      %p189 = scmp.ne.s32.totalorder %s178, %s181
      %p190 = scmp.eq.s32.totalorder %s21, 1
      %p191 = por %p189, %p190
      %p192 = scmp.ne.s32.totalorder %s181, %s182
      %p193 = scmp.eq.s32.totalorder %s21, 0
      %p194 = por %p192, %p193
      %p195 = scmp.ne.s32.totalorder %s181, %s182
      %p196 = scmp.eq.s32.totalorder %s22, 1
      %p197 = por %p195, %p196
      %p199 = scmp.ne.s32.totalorder %s182, %s198
      %p200 = scmp.eq.s32.totalorder %s22, 0
      %p201 = por %p199, %p200
      %p202 = scmp.le.s32.totalorder 1, %s16
      %p203 = scmp.lt.s32.totalorder %s16, 3
      %p204 = pnand %p202, %p203
      %p205 = pneg %p204
      // Predicated region
      $region9: #{simple_cnn_forward.1} parent=5 // pred_check
        _
      $region10: #{simple_cnn_forward.1} parent=5 // pred_check_branch
        %207 = sbr.rel (%p204) target = $region12
      $region11: #{simple_cnn_forward.1} parent=5 // pred_region
        %s208 = ssub.s32 %s16, 1
        // Predicated region
        $region13: #{simple_cnn_forward.1} parent=11 // pred_check
          %p209 = pneg %p63
        $region14: #{simple_cnn_forward.1} parent=11 // pred_check_branch
          %211 = sbr.rel (%p209) target = $region16
        $region15: #{simple_cnn_forward.1} parent=11 // pred_region
          _
        $region16: #{simple_cnn_forward.1} parent=11 // pred_fallthru
          _
        // Predicated region
        $region17: #{simple_cnn_forward.1} parent=11 // pred_check
          %p212 = pneg %p84
        $region18: #{simple_cnn_forward.1} parent=11 // pred_check_branch
          %214 = sbr.rel (%p212) target = $region20
        $region19: #{simple_cnn_forward.1} parent=11 // pred_region
          _
        $region20: #{simple_cnn_forward.1} parent=11 // pred_fallthru
          _
        // Predicated region
        $region21: #{simple_cnn_forward.1} parent=11 // pred_check
          %p215 = pneg %p105
        $region22: #{simple_cnn_forward.1} parent=11 // pred_check_branch
          %217 = sbr.rel (%p215) target = $region24
        $region23: #{simple_cnn_forward.1} parent=11 // pred_region
          _
        $region24: #{simple_cnn_forward.1} parent=11 // pred_fallthru
          _
        // Predicated region
        $region25: #{simple_cnn_forward.1} parent=11 // pred_check
          %p218 = pneg %p126
        $region26: #{simple_cnn_forward.1} parent=11 // pred_check_branch
          %220 = sbr.rel (%p218) target = $region28
        $region27: #{simple_cnn_forward.1} parent=11 // pred_region
          _
        $region28: #{simple_cnn_forward.1} parent=11 // pred_fallthru
          _
        // Predicated region
        $region29: #{simple_cnn_forward.1} parent=11 // pred_check
          %p221 = pneg %p147
        $region30: #{simple_cnn_forward.1} parent=11 // pred_check_branch
          %223 = sbr.rel (%p221) target = $region32
        $region31: #{simple_cnn_forward.1} parent=11 // pred_region
          _
        $region32: #{simple_cnn_forward.1} parent=11 // pred_fallthru
          _
        // Predicated region
        $region33: #{simple_cnn_forward.1} parent=11 // pred_check
          %p224 = pneg %p168
        $region34: #{simple_cnn_forward.1} parent=11 // pred_check_branch
          %226 = sbr.rel (%p224) target = $region36
        $region35: #{simple_cnn_forward.1} parent=11 // pred_region
          _
        $region36: #{simple_cnn_forward.1} parent=11 // pred_fallthru
          _
      $region12: #{simple_cnn_forward.1} parent=5 // pred_fallthru
        _
      %p227 = scmp.lt.s32.totalorder %s16, 2
      // Predicated region
      $region37: #{simple_cnn_forward.1} parent=5 // pred_check
        %p228 = pneg %p227
      $region38: #{simple_cnn_forward.1} parent=5 // pred_check_branch
        %230 = sbr.rel (%p228) target = $region40
      $region39: #{simple_cnn_forward.1} parent=5 // pred_region
        // Predicated region
        $region41: #{simple_cnn_forward.1} parent=39 // pred_check
          %p231 = pneg %p36
        $region42: #{simple_cnn_forward.1} parent=39 // pred_check_branch
          %233 = sbr.rel (%p231) target = $region44
        $region43: #{simple_cnn_forward.1} parent=39 // pred_region
          %p234 = scmp.lt.s32.totalorder %s16, 1
          %s235 = scalar_select %p234, %s16, 1
          %s236 = smul.addr %s235, 2
          %s237 = smul.addr %s236, 8
          %s238 = scalar_lea.vmem %s0, %s237
        $region44: #{simple_cnn_forward.1} parent=39 // pred_fallthru
          _
      $region40: #{simple_cnn_forward.1} parent=5 // pred_fallthru
        _
      %p239 = scmp.le.s32.totalorder 1, %s16
      %p240 = scmp.lt.s32.totalorder %s16, 3
      %p241 = pnand %p239, %p240
      %p242 = pneg %p241
      // Predicated region
      $region45: #{simple_cnn_forward.1} parent=5 // pred_check
        _
      $region46: #{simple_cnn_forward.1} parent=5 // pred_check_branch
        %244 = sbr.rel (%p241) target = $region48
      $region47: #{simple_cnn_forward.1} parent=5 // pred_region
        %s245 = ssub.s32 %s16, 1
        %p246 = scmp.lt.s32.totalorder %s21, 1
        %s247 = scalar_select %p246, %s21, 1
        %s248 = smul.addr %s247, 2
        %s249 = smul.addr %s248, 8
        %s250 = scalar_lea.vmem %s0, %s249
        %p251 = pneg %p42
        %p252 = pneg %p39
        %p253 = pneg %p63
        %p254 = pneg %p60
        %p255 = pneg %p84
        %p256 = pneg %p81
        %p257 = pneg %p105
        %p258 = pneg %p102
        %p259 = pneg %p126
        %p260 = pneg %p123
        %p261 = pneg %p147
        %p262 = pneg %p144
        %p263 = pneg %p168
        %p264 = pneg %p165
        %p265 = pneg %p194
        %p266 = pneg %p191
        %s267 = sand.u32 %s181, 1
        %s268 = scalar_lea.sflag [#allocation4], %s267
        %s269 = sand.u32 %s181, 1
        %s270 = scalar_lea.vmem [#allocation3], %s269
        %p271 = scmp.lt.s32.totalorder %s21, 1
        %s272 = scalar_select %p271, %s21, 1
        %s273 = smul.addr %s272, 2
        %s274 = smul.addr %s273, 8
        %s275 = scalar_lea.vmem %s0, %s274
        %v276 = vld [vmem:[%s275] sm:$0xff]
        %v277 = vld [vmem:[%s275 + $0x8] sm:$0xff]
        %v278 = vld [vmem:[%s1] sm:$0xff]
        %v279 = vld [vmem:[%s1 + $0x8] sm:$0xff]
        %v280 = vld [vmem:[%s1 + $0x10] sm:$0xff]
        %v281 = vld [vmem:[%s1 + $0x18] sm:$0xff]
        %v282 = vld [vmem:[%s1 + $0x20] sm:$0xff]
        %v283 = vld [vmem:[%s1 + $0x28] sm:$0xff]
        %v284 = vld [vmem:[%s1 + $0x30] sm:$0xff]
        %v285 = vld [vmem:[%s1 + $0x38] sm:$0xff]
        %v286 = vld [vmem:[%s1 + $0x40] sm:$0xff]
        %v287 = vld [vmem:[%s1 + $0x48] sm:$0xff]
        %v288 = vld [vmem:[%s1 + $0x50] sm:$0xff]
        %v289 = vld [vmem:[%s1 + $0x58] sm:$0xff]
        %v290 = vld [vmem:[%s1 + $0x60] sm:$0xff]
        %v291 = vld [vmem:[%s1 + $0x68] sm:$0xff]
        %v292 = vld [vmem:[%s1 + $0x70] sm:$0xff]
        %v293 = vld [vmem:[%s1 + $0x78] sm:$0xff]
        %v294 = vld [vmem:[%s1 + $0x80] sm:$0xff]
        %v295 = vld [vmem:[%s1 + $0x88] sm:$0xff]
        %v296 = vld [vmem:[%s1 + $0x90] sm:$0xff]
        %v297 = vld [vmem:[%s1 + $0x98] sm:$0xff]
        %v298 = vld [vmem:[%s1 + $0xa0] sm:$0xff]
        %v299 = vld [vmem:[%s1 + $0xa8] sm:$0xff]
        %v300 = vld [vmem:[%s1 + $0xb0] sm:$0xff]
        %v301 = vld [vmem:[%s1 + $0xb8] sm:$0xff]
        %v302 = vld [vmem:[%s1 + $0xc0] sm:$0x3f]
        %v303 = vld [vmem:[%s1 + $0xc8] sm:$0x3f]
        %v304 = vld [vmem:[%s1 + $0xd0] sm:$0x3f]
        %v305 = vld [vmem:[%s1 + $0xd8] sm:$0x3f]
        %vm306 = vcmask 441344
        %v308 = vsel %vm306, %v276, 0
        %v311 = vsel %vm306, %v277, 0
        %vm313 = vcmask 1045504
        %v315 = vsel %vm313, %v302, 0
        %v318 = vsel %vm313, %v303, 0
        %v321 = vsel %vm313, %v304, 0
        %v324 = vsel %vm313, %v305, 0
        %326 = vmatprep.subr.mxu0 %v279
        %327 = vmatpush1.msra.mxu0 %v278
        %328 = vmatprep.subr.mxu0 %v283
        %329 = vmatpush1.msra.mxu0 %v282
        %330 = vmatprep.subr.mxu0 %v287
        %331 = vmatpush1.msra.mxu0 %v286
        %332 = vmatprep.subr.mxu0 %v291
        %333 = vmatpush1.msra.mxu0 %v290
        %334 = vmatprep.subr.mxu0 %v295
        %335 = vmatpush1.msra.mxu0 %v294
        %336 = vmatprep.subr.mxu0 %v299
        %337 = vmatpush1.msra.mxu0 %v298
        %338 = vmatprep.subr.mxu0 %v318
        %339 = vmatpush1.msra.mxu0 %v315
        %340 = vmatprep.subr.mxu0 0.0
        %341 = vmatpush1.msra.mxu0 0.0
        %342 = vmatprep.subr.mxu0 0.0
        %343 = vmatpush1.msra.mxu0 0.0
        %344 = vmatprep.subr.mxu0 0.0
        %345 = vmatpush1.msra.mxu0 0.0
        %346 = vmatprep.subr.mxu0 0.0
        %347 = vmatpush1.msra.mxu0 0.0
        %348 = vmatprep.subr.mxu0 0.0
        %349 = vmatpush1.msra.mxu0 0.0
        %350 = vmatprep.subr.mxu0 0.0
        %351 = vmatpush1.msra.mxu0 0.0
        %352 = vmatprep.subr.mxu0 0.0
        %353 = vmatpush1.msra.mxu0 0.0
        %354 = vmatprep.subr.mxu0 0.0
        %355 = vmatpush1.msra.mxu0 0.0
        %356 = vmatprep.subr.mxu0 0.0
        %357 = vmatpush1.msra.mxu0 0.0
        %358 = vmatprep.subr.mxu0 0.0
        %359 = vmatpush1.msra.mxu0 0.0
        %360 = vmatprep.subr.mxu0 0.0
        %361 = vmatpush1.msra.mxu0 0.0
        %362 = vmatprep.subr.mxu0 0.0
        %363 = vmatpush1.msra.mxu0 0.0
        %364 = vmatprep.subr.mxu0 0.0
        %365 = vmatpush1.msra.mxu0 0.0
        %366 = vmatprep.subr.mxu0 0.0
        %367 = vmatpush1.msra.mxu0 0.0
        %368 = vmatprep.subr.mxu0 0.0
        %369 = vmatpush1.msra.mxu0 0.0
        %370 = vmatprep.subr.mxu0 0.0
        %371 = vmatpush1.msra.mxu0 0.0
        %372 = vmatprep.subr.mxu0 0.0
        %373 = vmatpush1.msra.mxu0 0.0
        %374 = vmatprep.subr.mxu0 0.0
        %375 = vmatpush1.msra.mxu0 0.0
        %376 = vmatprep.subr.mxu0 0.0
        %377 = vmatpush1.msra.mxu0 0.0
        %378 = vmatprep.subr.mxu0 0.0
        %379 = vmatpush1.msra.mxu0 0.0
        %380 = vmatprep.subr.mxu0 0.0
        %381 = vmatpush1.msra.mxu0 0.0
        %382 = vmatprep.subr.mxu0 0.0
        %383 = vmatpush1.msra.mxu0 0.0
        %384 = vmatprep.subr.mxu0 0.0
        %385 = vmatpush1.msra.mxu0 0.0
        %386 = vmatprep.subr.mxu0 0.0
        %387 = vmatpush1.msra.mxu0 0.0
        %388 = vmatprep.subr.mxu0 0.0
        %389 = vmatpush1.msra.mxu0 0.0
        %390 = vmatprep.mubr.f32.mxu0 0.0
        %391 = vmatmul.mubr.f32.gmra.mrb[0].mxu0 %v308
        %v392 = vpop.f32.mrb[0].mxu0
        %v393 = vadd.f32 0.0, %v392
        %v394 = vpop.f32.mrb[0].mxu0
        %v395 = vadd.f32 0.0, %v394
        %396 = vmatprep.mubr.f32.mxu0 0.0
        %397 = vmatmul.mubr.f32.gmra.mrb[0].mxu0 %v311
        %v398 = vpop.f32.mrb[0].mxu0
        %v399 = vadd.f32 0.0, %v398
        %v400 = vpop.f32.mrb[0].mxu0
        %v401 = vadd.f32 0.0, %v400
        %402 = vdwg.mxu0
        %403 = vmatprep.subr.mxu0 %v281
        %404 = vmatpush1.msra.mxu0 %v280
        %405 = vmatprep.subr.mxu0 %v285
        %406 = vmatpush1.msra.mxu0 %v284
        %407 = vmatprep.subr.mxu0 %v289
        %408 = vmatpush1.msra.mxu0 %v288
        %409 = vmatprep.subr.mxu0 %v293
        %410 = vmatpush1.msra.mxu0 %v292
        %411 = vmatprep.subr.mxu0 %v297
        %412 = vmatpush1.msra.mxu0 %v296
        %413 = vmatprep.subr.mxu0 %v301
        %414 = vmatpush1.msra.mxu0 %v300
        %415 = vmatprep.subr.mxu0 %v324
        %416 = vmatpush1.msra.mxu0 %v321
        %417 = vmatprep.subr.mxu0 0.0
        %418 = vmatpush1.msra.mxu0 0.0
        %419 = vmatprep.subr.mxu0 0.0
        %420 = vmatpush1.msra.mxu0 0.0
        %421 = vmatprep.subr.mxu0 0.0
        %422 = vmatpush1.msra.mxu0 0.0
        %423 = vmatprep.subr.mxu0 0.0
        %424 = vmatpush1.msra.mxu0 0.0
        %425 = vmatprep.subr.mxu0 0.0
        %426 = vmatpush1.msra.mxu0 0.0
        %427 = vmatprep.subr.mxu0 0.0
        %428 = vmatpush1.msra.mxu0 0.0
        %429 = vmatprep.subr.mxu0 0.0
        %430 = vmatpush1.msra.mxu0 0.0
        %431 = vmatprep.subr.mxu0 0.0
        %432 = vmatpush1.msra.mxu0 0.0
        %433 = vmatprep.subr.mxu0 0.0
        %434 = vmatpush1.msra.mxu0 0.0
        %435 = vmatprep.subr.mxu0 0.0
        %436 = vmatpush1.msra.mxu0 0.0
        %437 = vmatprep.subr.mxu0 0.0
        %438 = vmatpush1.msra.mxu0 0.0
        %439 = vmatprep.subr.mxu0 0.0
        %440 = vmatpush1.msra.mxu0 0.0
        %441 = vmatprep.subr.mxu0 0.0
        %442 = vmatpush1.msra.mxu0 0.0
        %443 = vmatprep.subr.mxu0 0.0
        %444 = vmatpush1.msra.mxu0 0.0
        %445 = vmatprep.subr.mxu0 0.0
        %446 = vmatpush1.msra.mxu0 0.0
        %447 = vmatprep.subr.mxu0 0.0
        %448 = vmatpush1.msra.mxu0 0.0
        %449 = vmatprep.subr.mxu0 0.0
        %450 = vmatpush1.msra.mxu0 0.0
        %451 = vmatprep.subr.mxu0 0.0
        %452 = vmatpush1.msra.mxu0 0.0
        %453 = vmatprep.subr.mxu0 0.0
        %454 = vmatpush1.msra.mxu0 0.0
        %455 = vmatprep.subr.mxu0 0.0
        %456 = vmatpush1.msra.mxu0 0.0
        %457 = vmatprep.subr.mxu0 0.0
        %458 = vmatpush1.msra.mxu0 0.0
        %459 = vmatprep.subr.mxu0 0.0
        %460 = vmatpush1.msra.mxu0 0.0
        %461 = vmatprep.subr.mxu0 0.0
        %462 = vmatpush1.msra.mxu0 0.0
        %463 = vmatprep.subr.mxu0 0.0
        %464 = vmatpush1.msra.mxu0 0.0
        %465 = vmatprep.subr.mxu0 0.0
        %466 = vmatpush1.msra.mxu0 0.0
        %467 = vmatprep.mubr.f32.mxu0 0.0
        %468 = vmatmul.mubr.f32.gmra.mrb[0].mxu0 %v308
        %v469 = vpop.f32.mrb[0].mxu0
        %v470 = vadd.f32 0.0, %v469
        %v471 = vpop.f32.mrb[0].mxu0
        %v472 = vadd.f32 0.0, %v471
        %473 = vmatprep.mubr.f32.mxu0 0.0
        %474 = vmatmul.mubr.f32.gmra.mrb[0].mxu0 %v311
        %v475 = vpop.f32.mrb[0].mxu0
        %v476 = vadd.f32 0.0, %v475
        %v477 = vpop.f32.mrb[0].mxu0
        %v478 = vadd.f32 0.0, %v477
        %479 = vdwg.mxu0
        %v480 = vmax.f32 %v393, %v399
        %v481 = vmax.f32 %v395, %v401
        %v482 = vmax.f32 %v470, %v476
        %v483 = vmax.f32 %v472, %v478
        %v484 = vld [vmem:[%s2] sm:$0xf]
        %v486 = vlaneseq
        %v487 = vshrl.u32 %v486, 7
        %v488 = vsub.s32 0, %v487
        %v489 = vrot.slane %v484, %v488
        %v490 = vlaneseq
        %v491 = vshrl.u32 %v490, 7
        %v492 = vsub.s32 1, %v491
        %v493 = vrot.slane %v484, %v492
        %v494 = vlaneseq
        %v495 = vshrl.u32 %v494, 7
        %v496 = vsub.s32 2, %v495
        %v497 = vrot.slane %v484, %v496
        %v498 = vlaneseq
        %v499 = vshrl.u32 %v498, 7
        %v500 = vsub.s32 3, %v499
        %v501 = vrot.slane %v484, %v500
        %v506 = vadd.f32 %v480, %v489
        %v507 = vadd.f32 %v481, %v493
        %v508 = vadd.f32 %v482, %v497
        %v509 = vadd.f32 %v483, %v501
        %v510 = vmax.f32 %v506, 0.0
        %v511 = vmax.f32 %v507, 0.0
        %v512 = vmax.f32 %v508, 0.0
        %v513 = vmax.f32 %v509, 0.0
        %v514 = vmax.f32 %v510, %v512
        %v515 = vmax.f32 %v511, %v513
        %v516 = vlaneseq
        %vm517 = vcmp.ge.s32.totalorder %v516, 0
        %vm518 = vcmp.lt.s32.totalorder %v516, 256
        %vm519 = vmand %vm517, %vm518
        %520 = vst.msk [vmem:[#allocation2] ss:$8 sm:$0x3] %vm519, 0.0
        %521 = vst.msk [vmem:[#allocation2] ss:$8 sm:$0x0] %vm519, 0.0
        %s522 = scalar_lea.vmem [#allocation2], 17
        %523 = vst.msk [vmem:[%s522] ss:$8 sm:$0x3] %vm519, 0.0
        %524 = vst.msk [vmem:[%s522] ss:$8 sm:$0x0] %vm519, 0.0
        %v527 = vrot.slane %v514, 7
        %v528 = vrot.slane %v515, 7
        %531 = vst [vmem:[#allocation2] sm:$0xfe] %v527
        %532 = vst [vmem:[#allocation2 + $0x8] sm:$0xfe] %v528
        %533 = vst [vmem:[#allocation2 + $0x10] sm:$0x1] %v527
        %534 = vst [vmem:[#allocation2 + $0x18] sm:$0x1] %v528
        %v535 = vld [vmem:[#allocation2] sm:$0xff]
        %v536 = vld [vmem:[#allocation2 + $0x8] sm:$0xff]
        %v537 = vld [vmem:[#allocation2] sm:$0xfe]
        %v538 = vld [vmem:[#allocation2 + $0x8] sm:$0xfe]
        %v539 = vld [vmem:[#allocation2 + $0x10] sm:$0x1]
        %v540 = vld [vmem:[#allocation2 + $0x18] sm:$0x1]
        %v541 = vld [vmem:[#allocation2] sm:$0xfc]
        %v542 = vld [vmem:[#allocation2 + $0x8] sm:$0xfc]
        %v543 = vld [vmem:[#allocation2 + $0x10] sm:$0x3]
        %v544 = vld [vmem:[#allocation2 + $0x18] sm:$0x3]
        %vm549 = vcmask 1046528
        %v550 = vrot.slane %v537, 1
        %v551 = vrot.slane %v539, 1
        %v552 = vsel %vm549, %v550, %v551
        %v553 = vrot.slane %v538, 1
        %v554 = vrot.slane %v540, 1
        %v555 = vsel %vm549, %v553, %v554
        %v562 = vrot.slane %v541, 2
        %v563 = vrot.slane %v543, 2
        %v564 = vsel %vm313, %v562, %v563
        %v565 = vrot.slane %v542, 2
        %v566 = vrot.slane %v544, 2
        %v567 = vsel %vm313, %v565, %v566
        %v570 = vld [vmem:[%s3] sm:$0xff]
        %v571 = vld [vmem:[%s3 + $0x8] sm:$0xff]
        %v572 = vld [vmem:[%s3 + $0x10] sm:$0xff]
        %v573 = vld [vmem:[%s3 + $0x18] sm:$0xff]
        %v574 = vld [vmem:[%s3 + $0x20] sm:$0xff]
        %v575 = vld [vmem:[%s3 + $0x28] sm:$0xff]
        %v576 = vld [vmem:[%s3 + $0x30] sm:$0xff]
        %v577 = vld [vmem:[%s3 + $0x38] sm:$0xff]
        %v578 = vld [vmem:[%s3 + $0x40] sm:$0xff]
        %v579 = vld [vmem:[%s3 + $0x48] sm:$0xff]
        %v580 = vld [vmem:[%s3 + $0x50] sm:$0xff]
        %v581 = vld [vmem:[%s3 + $0x58] sm:$0xff]
        %v582 = vld [vmem:[%s3 + $0x60] sm:$0xff]
        %v583 = vld [vmem:[%s3 + $0x68] sm:$0xff]
        %v584 = vld [vmem:[%s3 + $0x70] sm:$0xff]
        %v585 = vld [vmem:[%s3 + $0x78] sm:$0xff]
        %v586 = vld [vmem:[%s3 + $0x80] sm:$0xff]
        %v587 = vld [vmem:[%s3 + $0x88] sm:$0xff]
        %v588 = vld [vmem:[%s3 + $0x90] sm:$0xff]
        %v589 = vld [vmem:[%s3 + $0x98] sm:$0xff]
        %v590 = vld [vmem:[%s3 + $0xa0] sm:$0xff]
        %v591 = vld [vmem:[%s3 + $0xa8] sm:$0xff]
        %v592 = vld [vmem:[%s3 + $0xb0] sm:$0xff]
        %v593 = vld [vmem:[%s3 + $0xb8] sm:$0xff]
        %v594 = vld [vmem:[%s3 + $0xc0] sm:$0xff]
        %v595 = vld [vmem:[%s3 + $0xc8] sm:$0xff]
        %v596 = vld [vmem:[%s3 + $0xd0] sm:$0xff]
        %v597 = vld [vmem:[%s3 + $0xd8] sm:$0xff]
        %v598 = vld [vmem:[%s3 + $0xe0] sm:$0xff]
        %v599 = vld [vmem:[%s3 + $0xe8] sm:$0xff]
        %v600 = vld [vmem:[%s3 + $0xf0] sm:$0xff]
        %v601 = vld [vmem:[%s3 + $0xf8] sm:$0xff]
        %v602 = vld [vmem:[%s3 + $0x100] sm:$0xff]
        %v603 = vld [vmem:[%s3 + $0x108] sm:$0xff]
        %v604 = vld [vmem:[%s3 + $0x110] sm:$0xff]
        %v605 = vld [vmem:[%s3 + $0x118] sm:$0xff]
        %v606 = vld [vmem:[%s3 + $0x120] sm:$0xff]
        %v607 = vld [vmem:[%s3 + $0x128] sm:$0xff]
        %v608 = vld [vmem:[%s3 + $0x130] sm:$0xff]
        %v609 = vld [vmem:[%s3 + $0x138] sm:$0xff]
        %v610 = vld [vmem:[%s3 + $0x140] sm:$0xff]
        %v611 = vld [vmem:[%s3 + $0x148] sm:$0xff]
        %v612 = vld [vmem:[%s3 + $0x150] sm:$0xff]
        %v613 = vld [vmem:[%s3 + $0x158] sm:$0xff]
        %v614 = vld [vmem:[%s3 + $0x160] sm:$0xff]
        %v615 = vld [vmem:[%s3 + $0x168] sm:$0xff]
        %v616 = vld [vmem:[%s3 + $0x170] sm:$0xff]
        %v617 = vld [vmem:[%s3 + $0x178] sm:$0xff]
        %v618 = vld [vmem:[%s3 + $0x180] sm:$0xff]
        %v619 = vld [vmem:[%s3 + $0x188] sm:$0xff]
        %v620 = vld [vmem:[%s3 + $0x190] sm:$0xff]
        %v621 = vld [vmem:[%s3 + $0x198] sm:$0xff]
        %v622 = vld [vmem:[%s3 + $0x1a0] sm:$0xff]
        %v623 = vld [vmem:[%s3 + $0x1a8] sm:$0xff]
        %v624 = vld [vmem:[%s3 + $0x1b0] sm:$0xff]
        %v625 = vld [vmem:[%s3 + $0x1b8] sm:$0xff]
        %v626 = vld [vmem:[%s3 + $0x1c0] sm:$0xff]
        %v627 = vld [vmem:[%s3 + $0x1c8] sm:$0xff]
        %v628 = vld [vmem:[%s3 + $0x1d0] sm:$0xff]
        %v629 = vld [vmem:[%s3 + $0x1d8] sm:$0xff]
        %v630 = vld [vmem:[%s3 + $0x1e0] sm:$0xff]
        %v631 = vld [vmem:[%s3 + $0x1e8] sm:$0xff]
        %v632 = vld [vmem:[%s3 + $0x1f0] sm:$0xff]
        %v633 = vld [vmem:[%s3 + $0x1f8] sm:$0xff]
        %v634 = vld [vmem:[%s3 + $0x200] sm:$0xff]
        %v635 = vld [vmem:[%s3 + $0x208] sm:$0xff]
        %v636 = vld [vmem:[%s3 + $0x210] sm:$0xff]
        %v637 = vld [vmem:[%s3 + $0x218] sm:$0xff]
        %v638 = vld [vmem:[%s3 + $0x220] sm:$0xff]
        %v639 = vld [vmem:[%s3 + $0x228] sm:$0xff]
        %v640 = vld [vmem:[%s3 + $0x230] sm:$0xff]
        %v641 = vld [vmem:[%s3 + $0x238] sm:$0xff]
        %v642 = vld [vmem:[%s3 + $0x240] sm:$0xff]
        %v643 = vld [vmem:[%s3 + $0x248] sm:$0xff]
        %v644 = vld [vmem:[%s3 + $0x250] sm:$0xff]
        %v645 = vld [vmem:[%s3 + $0x258] sm:$0xff]
        %v646 = vld [vmem:[%s3 + $0x260] sm:$0xff]
        %v647 = vld [vmem:[%s3 + $0x268] sm:$0xff]
        %v648 = vld [vmem:[%s3 + $0x270] sm:$0xff]
        %v649 = vld [vmem:[%s3 + $0x278] sm:$0xff]
        %v650 = vld [vmem:[%s3 + $0x280] sm:$0xff]
        %v651 = vld [vmem:[%s3 + $0x288] sm:$0xff]
        %v652 = vld [vmem:[%s3 + $0x290] sm:$0xff]
        %v653 = vld [vmem:[%s3 + $0x298] sm:$0xff]
        %v654 = vld [vmem:[%s3 + $0x2a0] sm:$0xff]
        %v655 = vld [vmem:[%s3 + $0x2a8] sm:$0xff]
        %v656 = vld [vmem:[%s3 + $0x2b0] sm:$0xff]
        %v657 = vld [vmem:[%s3 + $0x2b8] sm:$0xff]
        %v658 = vld [vmem:[%s3 + $0x2c0] sm:$0xff]
        %v659 = vld [vmem:[%s3 + $0x2c8] sm:$0xff]
        %v660 = vld [vmem:[%s3 + $0x2d0] sm:$0xff]
        %v661 = vld [vmem:[%s3 + $0x2d8] sm:$0xff]
        %v662 = vld [vmem:[%s3 + $0x2e0] sm:$0xff]
        %v663 = vld [vmem:[%s3 + $0x2e8] sm:$0xff]
        %v664 = vld [vmem:[%s3 + $0x2f0] sm:$0xff]
        %v665 = vld [vmem:[%s3 + $0x2f8] sm:$0xff]
        %v666 = vld [vmem:[%s3 + $0x300] sm:$0xff]
        %v667 = vld [vmem:[%s3 + $0x308] sm:$0xff]
        %v668 = vld [vmem:[%s3 + $0x310] sm:$0xff]
        %v669 = vld [vmem:[%s3 + $0x318] sm:$0xff]
        %v670 = vld [vmem:[%s3 + $0x320] sm:$0xff]
        %v671 = vld [vmem:[%s3 + $0x328] sm:$0xff]
        %v672 = vld [vmem:[%s3 + $0x330] sm:$0xff]
        %v673 = vld [vmem:[%s3 + $0x338] sm:$0xff]
        %v674 = vld [vmem:[%s3 + $0x340] sm:$0xff]
        %v675 = vld [vmem:[%s3 + $0x348] sm:$0xff]
        %v676 = vld [vmem:[%s3 + $0x350] sm:$0xff]
        %v677 = vld [vmem:[%s3 + $0x358] sm:$0xff]
        %v678 = vld [vmem:[%s3 + $0x360] sm:$0xff]
        %v679 = vld [vmem:[%s3 + $0x368] sm:$0xff]
        %v680 = vld [vmem:[%s3 + $0x370] sm:$0xff]
        %v681 = vld [vmem:[%s3 + $0x378] sm:$0xff]
        %v682 = vld [vmem:[%s3 + $0x380] sm:$0xff]
        %v683 = vld [vmem:[%s3 + $0x388] sm:$0xff]
        %v684 = vld [vmem:[%s3 + $0x390] sm:$0xff]
        %v685 = vld [vmem:[%s3 + $0x398] sm:$0xff]
        %v686 = vld [vmem:[%s3 + $0x3a0] sm:$0xff]
        %v687 = vld [vmem:[%s3 + $0x3a8] sm:$0xff]
        %v688 = vld [vmem:[%s3 + $0x3b0] sm:$0xff]
        %v689 = vld [vmem:[%s3 + $0x3b8] sm:$0xff]
        %v690 = vld [vmem:[%s3 + $0x3c0] sm:$0xff]
        %v691 = vld [vmem:[%s3 + $0x3c8] sm:$0xff]
        %v692 = vld [vmem:[%s3 + $0x3d0] sm:$0xff]
        %v693 = vld [vmem:[%s3 + $0x3d8] sm:$0xff]
        %v694 = vld [vmem:[%s3 + $0x3e0] sm:$0xff]
        %v695 = vld [vmem:[%s3 + $0x3e8] sm:$0xff]
        %v696 = vld [vmem:[%s3 + $0x3f0] sm:$0xff]
        %v697 = vld [vmem:[%s3 + $0x3f8] sm:$0xff]
        %v698 = vld [vmem:[%s3 + $0x400] sm:$0xff]
        %v699 = vld [vmem:[%s3 + $0x408] sm:$0xff]
        %v700 = vld [vmem:[%s3 + $0x410] sm:$0xff]
        %v701 = vld [vmem:[%s3 + $0x418] sm:$0xff]
        %v702 = vld [vmem:[%s3 + $0x420] sm:$0xff]
        %v703 = vld [vmem:[%s3 + $0x428] sm:$0xff]
        %v704 = vld [vmem:[%s3 + $0x430] sm:$0xff]
        %v705 = vld [vmem:[%s3 + $0x438] sm:$0xff]
        %v706 = vld [vmem:[%s3 + $0x440] sm:$0xff]
        %v707 = vld [vmem:[%s3 + $0x448] sm:$0xff]
        %v708 = vld [vmem:[%s3 + $0x450] sm:$0xff]
        %v709 = vld [vmem:[%s3 + $0x458] sm:$0xff]
        %v710 = vld [vmem:[%s3 + $0x460] sm:$0xff]
        %v711 = vld [vmem:[%s3 + $0x468] sm:$0xff]
        %v712 = vld [vmem:[%s3 + $0x470] sm:$0xff]
        %v713 = vld [vmem:[%s3 + $0x478] sm:$0xff]
        %v714 = vld [vmem:[%s3 + $0x480] sm:$0xff]
        %v715 = vld [vmem:[%s3 + $0x488] sm:$0xff]
        %v716 = vld [vmem:[%s3 + $0x490] sm:$0xff]
        %v717 = vld [vmem:[%s3 + $0x498] sm:$0xff]
        %v718 = vld [vmem:[%s3 + $0x4a0] sm:$0xff]
        %v719 = vld [vmem:[%s3 + $0x4a8] sm:$0xff]
        %v720 = vld [vmem:[%s3 + $0x4b0] sm:$0xff]
        %v721 = vld [vmem:[%s3 + $0x4b8] sm:$0xff]
        %v722 = vld [vmem:[%s3 + $0x4c0] sm:$0xff]
        %v723 = vld [vmem:[%s3 + $0x4c8] sm:$0xff]
        %v724 = vld [vmem:[%s3 + $0x4d0] sm:$0xff]
        %v725 = vld [vmem:[%s3 + $0x4d8] sm:$0xff]
        %v726 = vld [vmem:[%s3 + $0x4e0] sm:$0xff]
        %v727 = vld [vmem:[%s3 + $0x4e8] sm:$0xff]
        %v728 = vld [vmem:[%s3 + $0x4f0] sm:$0xff]
        %v729 = vld [vmem:[%s3 + $0x4f8] sm:$0xff]
        %v730 = vld [vmem:[%s3 + $0x500] sm:$0xff]
        %v731 = vld [vmem:[%s3 + $0x508] sm:$0xff]
        %v732 = vld [vmem:[%s3 + $0x510] sm:$0xff]
        %v733 = vld [vmem:[%s3 + $0x518] sm:$0xff]
        %v734 = vld [vmem:[%s3 + $0x520] sm:$0xff]
        %v735 = vld [vmem:[%s3 + $0x528] sm:$0xff]
        %v736 = vld [vmem:[%s3 + $0x530] sm:$0xff]
        %v737 = vld [vmem:[%s3 + $0x538] sm:$0xff]
        %v738 = vld [vmem:[%s3 + $0x540] sm:$0xff]
        %v739 = vld [vmem:[%s3 + $0x548] sm:$0xff]
        %v740 = vld [vmem:[%s3 + $0x550] sm:$0xff]
        %v741 = vld [vmem:[%s3 + $0x558] sm:$0xff]
        %v742 = vld [vmem:[%s3 + $0x560] sm:$0xff]
        %v743 = vld [vmem:[%s3 + $0x568] sm:$0xff]
        %v744 = vld [vmem:[%s3 + $0x570] sm:$0xff]
        %v745 = vld [vmem:[%s3 + $0x578] sm:$0xff]
        %v746 = vld [vmem:[%s3 + $0x580] sm:$0xff]
        %v747 = vld [vmem:[%s3 + $0x588] sm:$0xff]
        %v748 = vld [vmem:[%s3 + $0x590] sm:$0xff]
        %v749 = vld [vmem:[%s3 + $0x598] sm:$0xff]
        %v750 = vld [vmem:[%s3 + $0x5a0] sm:$0xff]
        %v751 = vld [vmem:[%s3 + $0x5a8] sm:$0xff]
        %v752 = vld [vmem:[%s3 + $0x5b0] sm:$0xff]
        %v753 = vld [vmem:[%s3 + $0x5b8] sm:$0xff]
        %v754 = vld [vmem:[%s3 + $0x5c0] sm:$0xff]
        %v755 = vld [vmem:[%s3 + $0x5c8] sm:$0xff]
        %v756 = vld [vmem:[%s3 + $0x5d0] sm:$0xff]
        %v757 = vld [vmem:[%s3 + $0x5d8] sm:$0xff]
        %v758 = vld [vmem:[%s3 + $0x5e0] sm:$0xff]
        %v759 = vld [vmem:[%s3 + $0x5e8] sm:$0xff]
        %v760 = vld [vmem:[%s3 + $0x5f0] sm:$0xff]
        %v761 = vld [vmem:[%s3 + $0x5f8] sm:$0xff]
        %v762 = vld [vmem:[%s3 + $0x600] sm:$0xff]
        %v763 = vld [vmem:[%s3 + $0x608] sm:$0xff]
        %v764 = vld [vmem:[%s3 + $0x610] sm:$0xff]
        %v765 = vld [vmem:[%s3 + $0x618] sm:$0xff]
        %v766 = vld [vmem:[%s3 + $0x620] sm:$0xff]
        %v767 = vld [vmem:[%s3 + $0x628] sm:$0xff]
        %v768 = vld [vmem:[%s3 + $0x630] sm:$0xff]
        %v769 = vld [vmem:[%s3 + $0x638] sm:$0xff]
        %v770 = vld [vmem:[%s3 + $0x640] sm:$0xff]
        %v771 = vld [vmem:[%s3 + $0x648] sm:$0xff]
        %v772 = vld [vmem:[%s3 + $0x650] sm:$0xff]
        %v773 = vld [vmem:[%s3 + $0x658] sm:$0xff]
        %v774 = vld [vmem:[%s3 + $0x660] sm:$0xff]
        %v775 = vld [vmem:[%s3 + $0x668] sm:$0xff]
        %v776 = vld [vmem:[%s3 + $0x670] sm:$0xff]
        %v777 = vld [vmem:[%s3 + $0x678] sm:$0xff]
        %v778 = vld [vmem:[%s3 + $0x680] sm:$0xff]
        %v779 = vld [vmem:[%s3 + $0x688] sm:$0xff]
        %v780 = vld [vmem:[%s3 + $0x690] sm:$0xff]
        %v781 = vld [vmem:[%s3 + $0x698] sm:$0xff]
        %v782 = vld [vmem:[%s3 + $0x6a0] sm:$0xff]
        %v783 = vld [vmem:[%s3 + $0x6a8] sm:$0xff]
        %v784 = vld [vmem:[%s3 + $0x6b0] sm:$0xff]
        %v785 = vld [vmem:[%s3 + $0x6b8] sm:$0xff]
        %v786 = vld [vmem:[%s3 + $0x6c0] sm:$0xff]
        %v787 = vld [vmem:[%s3 + $0x6c8] sm:$0xff]
        %v788 = vld [vmem:[%s3 + $0x6d0] sm:$0xff]
        %v789 = vld [vmem:[%s3 + $0x6d8] sm:$0xff]
        %v790 = vld [vmem:[%s3 + $0x6e0] sm:$0xff]
        %v791 = vld [vmem:[%s3 + $0x6e8] sm:$0xff]
        %v792 = vld [vmem:[%s3 + $0x6f0] sm:$0xff]
        %v793 = vld [vmem:[%s3 + $0x6f8] sm:$0xff]
        %v794 = vld [vmem:[%s3 + $0x700] sm:$0xff]
        %v795 = vld [vmem:[%s3 + $0x708] sm:$0xff]
        %v796 = vld [vmem:[%s3 + $0x710] sm:$0xff]
        %v797 = vld [vmem:[%s3 + $0x718] sm:$0xff]
        %v798 = vld [vmem:[%s3 + $0x720] sm:$0xff]
        %v799 = vld [vmem:[%s3 + $0x728] sm:$0xff]
        %v800 = vld [vmem:[%s3 + $0x730] sm:$0xff]
        %v801 = vld [vmem:[%s3 + $0x738] sm:$0xff]
        %v802 = vld [vmem:[%s3 + $0x740] sm:$0xff]
        %v803 = vld [vmem:[%s3 + $0x748] sm:$0xff]
        %v804 = vld [vmem:[%s3 + $0x750] sm:$0xff]
        %v805 = vld [vmem:[%s3 + $0x758] sm:$0xff]
        %v806 = vld [vmem:[%s3 + $0x760] sm:$0xff]
        %v807 = vld [vmem:[%s3 + $0x768] sm:$0xff]
        %v808 = vld [vmem:[%s3 + $0x770] sm:$0xff]
        %v809 = vld [vmem:[%s3 + $0x778] sm:$0xff]
        %v810 = vld [vmem:[%s3 + $0x780] sm:$0xff]
        %v811 = vld [vmem:[%s3 + $0x788] sm:$0xff]
        %v812 = vld [vmem:[%s3 + $0x790] sm:$0xff]
        %v813 = vld [vmem:[%s3 + $0x798] sm:$0xff]
        %v814 = vld [vmem:[%s3 + $0x7a0] sm:$0xff]
        %v815 = vld [vmem:[%s3 + $0x7a8] sm:$0xff]
        %v816 = vld [vmem:[%s3 + $0x7b0] sm:$0xff]
        %v817 = vld [vmem:[%s3 + $0x7b8] sm:$0xff]
        %v818 = vld [vmem:[%s3 + $0x7c0] sm:$0xff]
        %v819 = vld [vmem:[%s3 + $0x7c8] sm:$0xff]
        %v820 = vld [vmem:[%s3 + $0x7d0] sm:$0xff]
        %v821 = vld [vmem:[%s3 + $0x7d8] sm:$0xff]
        %v822 = vld [vmem:[%s3 + $0x7e0] sm:$0xff]
        %v823 = vld [vmem:[%s3 + $0x7e8] sm:$0xff]
        %v824 = vld [vmem:[%s3 + $0x7f0] sm:$0xff]
        %v825 = vld [vmem:[%s3 + $0x7f8] sm:$0xff]
        %v826 = vld [vmem:[%s3 + $0x800] sm:$0xff]
        %v827 = vld [vmem:[%s3 + $0x808] sm:$0xff]
        %v828 = vld [vmem:[%s3 + $0x810] sm:$0xff]
        %v829 = vld [vmem:[%s3 + $0x818] sm:$0xff]
        %v830 = vld [vmem:[%s3 + $0x820] sm:$0xff]
        %v831 = vld [vmem:[%s3 + $0x828] sm:$0xff]
        %v832 = vld [vmem:[%s3 + $0x830] sm:$0xff]
        %v833 = vld [vmem:[%s3 + $0x838] sm:$0xff]
        %v834 = vld [vmem:[%s3 + $0x840] sm:$0xff]
        %v835 = vld [vmem:[%s3 + $0x848] sm:$0xff]
        %v836 = vld [vmem:[%s3 + $0x850] sm:$0xff]
        %v837 = vld [vmem:[%s3 + $0x858] sm:$0xff]
        %v838 = vld [vmem:[%s3 + $0x860] sm:$0xff]
        %v839 = vld [vmem:[%s3 + $0x868] sm:$0xff]
        %v840 = vld [vmem:[%s3 + $0x870] sm:$0xff]
        %v841 = vld [vmem:[%s3 + $0x878] sm:$0xff]
        %v842 = vld [vmem:[%s3 + $0x880] sm:$0xff]
        %v843 = vld [vmem:[%s3 + $0x888] sm:$0xff]
        %v844 = vld [vmem:[%s3 + $0x890] sm:$0xff]
        %v845 = vld [vmem:[%s3 + $0x898] sm:$0xff]
        %v846 = vld [vmem:[%s3 + $0x8a0] sm:$0xff]
        %v847 = vld [vmem:[%s3 + $0x8a8] sm:$0xff]
        %v848 = vld [vmem:[%s3 + $0x8b0] sm:$0xff]
        %v849 = vld [vmem:[%s3 + $0x8b8] sm:$0xff]
        %v850 = vld [vmem:[%s3 + $0x8c0] sm:$0xff]
        %v851 = vld [vmem:[%s3 + $0x8c8] sm:$0xff]
        %v852 = vld [vmem:[%s3 + $0x8d0] sm:$0xff]
        %v853 = vld [vmem:[%s3 + $0x8d8] sm:$0xff]
        %v854 = vld [vmem:[%s3 + $0x8e0] sm:$0xff]
        %v855 = vld [vmem:[%s3 + $0x8e8] sm:$0xff]
        %v856 = vld [vmem:[%s3 + $0x8f0] sm:$0xff]
        %v857 = vld [vmem:[%s3 + $0x8f8] sm:$0xff]
        %v858 = vld [vmem:[%s3 + $0x900] sm:$0xff]
        %v859 = vld [vmem:[%s3 + $0x908] sm:$0xff]
        %v860 = vld [vmem:[%s3 + $0x910] sm:$0xff]
        %v861 = vld [vmem:[%s3 + $0x918] sm:$0xff]
        %v862 = vld [vmem:[%s3 + $0x920] sm:$0xff]
        %v863 = vld [vmem:[%s3 + $0x928] sm:$0xff]
        %v864 = vld [vmem:[%s3 + $0x930] sm:$0xff]
        %v865 = vld [vmem:[%s3 + $0x938] sm:$0xff]
        %v866 = vld [vmem:[%s3 + $0x940] sm:$0xff]
        %v867 = vld [vmem:[%s3 + $0x948] sm:$0xff]
        %v868 = vld [vmem:[%s3 + $0x950] sm:$0xff]
        %v869 = vld [vmem:[%s3 + $0x958] sm:$0xff]
        %v870 = vld [vmem:[%s3 + $0x960] sm:$0xff]
        %v871 = vld [vmem:[%s3 + $0x968] sm:$0xff]
        %v872 = vld [vmem:[%s3 + $0x970] sm:$0xff]
        %v873 = vld [vmem:[%s3 + $0x978] sm:$0xff]
        %v874 = vld [vmem:[%s3 + $0x980] sm:$0xff]
        %v875 = vld [vmem:[%s3 + $0x988] sm:$0xff]
        %v876 = vld [vmem:[%s3 + $0x990] sm:$0xff]
        %v877 = vld [vmem:[%s3 + $0x998] sm:$0xff]
        %v878 = vld [vmem:[%s3 + $0x9a0] sm:$0xff]
        %v879 = vld [vmem:[%s3 + $0x9a8] sm:$0xff]
        %v880 = vld [vmem:[%s3 + $0x9b0] sm:$0xff]
        %v881 = vld [vmem:[%s3 + $0x9b8] sm:$0xff]
        %v882 = vld [vmem:[%s3 + $0x9c0] sm:$0xff]
        %v883 = vld [vmem:[%s3 + $0x9c8] sm:$0xff]
        %v884 = vld [vmem:[%s3 + $0x9d0] sm:$0xff]
        %v885 = vld [vmem:[%s3 + $0x9d8] sm:$0xff]
        %v886 = vld [vmem:[%s3 + $0x9e0] sm:$0xff]
        %v887 = vld [vmem:[%s3 + $0x9e8] sm:$0xff]
        %v888 = vld [vmem:[%s3 + $0x9f0] sm:$0xff]
        %v889 = vld [vmem:[%s3 + $0x9f8] sm:$0xff]
        %v890 = vld [vmem:[%s3 + $0xa00] sm:$0xff]
        %v891 = vld [vmem:[%s3 + $0xa08] sm:$0xff]
        %v892 = vld [vmem:[%s3 + $0xa10] sm:$0xff]
        %v893 = vld [vmem:[%s3 + $0xa18] sm:$0xff]
        %v894 = vld [vmem:[%s3 + $0xa20] sm:$0xff]
        %v895 = vld [vmem:[%s3 + $0xa28] sm:$0xff]
        %v896 = vld [vmem:[%s3 + $0xa30] sm:$0xff]
        %v897 = vld [vmem:[%s3 + $0xa38] sm:$0xff]
        %v898 = vld [vmem:[%s3 + $0xa40] sm:$0xff]
        %v899 = vld [vmem:[%s3 + $0xa48] sm:$0xff]
        %v900 = vld [vmem:[%s3 + $0xa50] sm:$0xff]
        %v901 = vld [vmem:[%s3 + $0xa58] sm:$0xff]
        %v902 = vld [vmem:[%s3 + $0xa60] sm:$0xff]
        %v903 = vld [vmem:[%s3 + $0xa68] sm:$0xff]
        %v904 = vld [vmem:[%s3 + $0xa70] sm:$0xff]
        %v905 = vld [vmem:[%s3 + $0xa78] sm:$0xff]
        %v906 = vld [vmem:[%s3 + $0xa80] sm:$0xff]
        %v907 = vld [vmem:[%s3 + $0xa88] sm:$0xff]
        %v908 = vld [vmem:[%s3 + $0xa90] sm:$0xff]
        %v909 = vld [vmem:[%s3 + $0xa98] sm:$0xff]
        %v910 = vld [vmem:[%s3 + $0xaa0] sm:$0xff]
        %v911 = vld [vmem:[%s3 + $0xaa8] sm:$0xff]
        %v912 = vld [vmem:[%s3 + $0xab0] sm:$0xff]
        %v913 = vld [vmem:[%s3 + $0xab8] sm:$0xff]
        %v914 = vld [vmem:[%s3 + $0xac0] sm:$0xff]
        %v915 = vld [vmem:[%s3 + $0xac8] sm:$0xff]
        %v916 = vld [vmem:[%s3 + $0xad0] sm:$0xff]
        %v917 = vld [vmem:[%s3 + $0xad8] sm:$0xff]
        %v918 = vld [vmem:[%s3 + $0xae0] sm:$0xff]
        %v919 = vld [vmem:[%s3 + $0xae8] sm:$0xff]
        %v920 = vld [vmem:[%s3 + $0xaf0] sm:$0xff]
        %v921 = vld [vmem:[%s3 + $0xaf8] sm:$0xff]
        %v922 = vld [vmem:[%s3 + $0xb00] sm:$0xff]
        %v923 = vld [vmem:[%s3 + $0xb08] sm:$0xff]
        %v924 = vld [vmem:[%s3 + $0xb10] sm:$0xff]
        %v925 = vld [vmem:[%s3 + $0xb18] sm:$0xff]
        %v926 = vld [vmem:[%s3 + $0xb20] sm:$0xff]
        %v927 = vld [vmem:[%s3 + $0xb28] sm:$0xff]
        %v928 = vld [vmem:[%s3 + $0xb30] sm:$0xff]
        %v929 = vld [vmem:[%s3 + $0xb38] sm:$0xff]
        %v930 = vld [vmem:[%s3 + $0xb40] sm:$0xff]
        %v931 = vld [vmem:[%s3 + $0xb48] sm:$0xff]
        %v932 = vld [vmem:[%s3 + $0xb50] sm:$0xff]
        %v933 = vld [vmem:[%s3 + $0xb58] sm:$0xff]
        %v934 = vld [vmem:[%s3 + $0xb60] sm:$0xff]
        %v935 = vld [vmem:[%s3 + $0xb68] sm:$0xff]
        %v936 = vld [vmem:[%s3 + $0xb70] sm:$0xff]
        %v937 = vld [vmem:[%s3 + $0xb78] sm:$0xff]
        %v938 = vld [vmem:[%s3 + $0xb80] sm:$0xff]
        %v939 = vld [vmem:[%s3 + $0xb88] sm:$0xff]
        %v940 = vld [vmem:[%s3 + $0xb90] sm:$0xff]
        %v941 = vld [vmem:[%s3 + $0xb98] sm:$0xff]
        %v942 = vld [vmem:[%s3 + $0xba0] sm:$0xff]
        %v943 = vld [vmem:[%s3 + $0xba8] sm:$0xff]
        %v944 = vld [vmem:[%s3 + $0xbb0] sm:$0xff]
        %v945 = vld [vmem:[%s3 + $0xbb8] sm:$0xff]
        %v946 = vld [vmem:[%s3 + $0xbc0] sm:$0xff]
        %v947 = vld [vmem:[%s3 + $0xbc8] sm:$0xff]
        %v948 = vld [vmem:[%s3 + $0xbd0] sm:$0xff]
        %v949 = vld [vmem:[%s3 + $0xbd8] sm:$0xff]
        %v950 = vld [vmem:[%s3 + $0xbe0] sm:$0xff]
        %v951 = vld [vmem:[%s3 + $0xbe8] sm:$0xff]
        %v952 = vld [vmem:[%s3 + $0xbf0] sm:$0xff]
        %v953 = vld [vmem:[%s3 + $0xbf8] sm:$0xff]
        %v954 = vld [vmem:[%s4] sm:$0xf]
        %v956 = vlaneseq
        %v957 = vshrl.u32 %v956, 7
        %v958 = vsub.s32 0, %v957
        %v959 = vrot.slane %v954, %v958
        %v960 = vlaneseq
        %v961 = vshrl.u32 %v960, 7
        %v962 = vsub.s32 1, %v961
        %v963 = vrot.slane %v954, %v962
        %v964 = vlaneseq
        %v965 = vshrl.u32 %v964, 7
        %v966 = vsub.s32 2, %v965
        %v967 = vrot.slane %v954, %v966
        %v968 = vlaneseq
        %v969 = vshrl.u32 %v968, 7
        %v970 = vsub.s32 3, %v969
        %v971 = vrot.slane %v954, %v970
        %976 = vmatprep.subr.mxu0 %v571
        %977 = vmatpush1.msra.mxu0 %v570
        %978 = vmatprep.subr.mxu0 %v575
        %979 = vmatpush1.msra.mxu0 %v574
        %980 = vmatprep.subr.mxu0 %v579
        %981 = vmatpush1.msra.mxu0 %v578
        %982 = vmatprep.subr.mxu0 %v583
        %983 = vmatpush1.msra.mxu0 %v582
        %984 = vmatprep.subr.mxu0 %v587
        %985 = vmatpush1.msra.mxu0 %v586
        %986 = vmatprep.subr.mxu0 %v591
        %987 = vmatpush1.msra.mxu0 %v590
        %988 = vmatprep.subr.mxu0 %v595
        %989 = vmatpush1.msra.mxu0 %v594
        %990 = vmatprep.subr.mxu0 %v599
        %991 = vmatpush1.msra.mxu0 %v598
        %992 = vmatprep.subr.mxu0 %v603
        %993 = vmatpush1.msra.mxu0 %v602
        %994 = vmatprep.subr.mxu0 %v607
        %995 = vmatpush1.msra.mxu0 %v606
        %996 = vmatprep.subr.mxu0 %v611
        %997 = vmatpush1.msra.mxu0 %v610
        %998 = vmatprep.subr.mxu0 %v615
        %999 = vmatpush1.msra.mxu0 %v614
        %1000 = vmatprep.subr.mxu0 %v619
        %1001 = vmatpush1.msra.mxu0 %v618
        %1002 = vmatprep.subr.mxu0 %v623
        %1003 = vmatpush1.msra.mxu0 %v622
        %1004 = vmatprep.subr.mxu0 %v627
        %1005 = vmatpush1.msra.mxu0 %v626
        %1006 = vmatprep.subr.mxu0 %v631
        %1007 = vmatpush1.msra.mxu0 %v630
        %1008 = vmatprep.subr.mxu0 %v635
        %1009 = vmatpush1.msra.mxu0 %v634
        %1010 = vmatprep.subr.mxu0 %v639
        %1011 = vmatpush1.msra.mxu0 %v638
        %1012 = vmatprep.subr.mxu0 %v643
        %1013 = vmatpush1.msra.mxu0 %v642
        %1014 = vmatprep.subr.mxu0 %v647
        %1015 = vmatpush1.msra.mxu0 %v646
        %1016 = vmatprep.subr.mxu0 %v651
        %1017 = vmatpush1.msra.mxu0 %v650
        %1018 = vmatprep.subr.mxu0 %v655
        %1019 = vmatpush1.msra.mxu0 %v654
        %1020 = vmatprep.subr.mxu0 %v659
        %1021 = vmatpush1.msra.mxu0 %v658
        %1022 = vmatprep.subr.mxu0 %v663
        %1023 = vmatpush1.msra.mxu0 %v662
        %1024 = vmatprep.subr.mxu0 %v667
        %1025 = vmatpush1.msra.mxu0 %v666
        %1026 = vmatprep.subr.mxu0 %v671
        %1027 = vmatpush1.msra.mxu0 %v670
        %1028 = vmatprep.subr.mxu0 %v675
        %1029 = vmatpush1.msra.mxu0 %v674
        %1030 = vmatprep.subr.mxu0 %v679
        %1031 = vmatpush1.msra.mxu0 %v678
        %1032 = vmatprep.subr.mxu0 %v683
        %1033 = vmatpush1.msra.mxu0 %v682
        %1034 = vmatprep.subr.mxu0 %v687
        %1035 = vmatpush1.msra.mxu0 %v686
        %1036 = vmatprep.subr.mxu0 %v691
        %1037 = vmatpush1.msra.mxu0 %v690
        %1038 = vmatprep.subr.mxu0 %v695
        %1039 = vmatpush1.msra.mxu0 %v694
        %1040 = vmatprep.mubr.f32.mxu0 %v536
        %1041 = vmatmul.mubr.f32.gmra.mrb[0].mxu0 %v535
        %v1042 = vpop.f32.mrb[0].mxu0
        %v1043 = vadd.f32 %v959, %v1042
        %v1044 = vpop.f32.mrb[0].mxu0
        %v1045 = vadd.f32 %v963, %v1044
        %1046 = vdwg.mxu0
        %1047 = vmatprep.subr.mxu0 %v699
        %1048 = vmatpush1.msra.mxu0 %v698
        %1049 = vmatprep.subr.mxu0 %v703
        %1050 = vmatpush1.msra.mxu0 %v702
        %1051 = vmatprep.subr.mxu0 %v707
        %1052 = vmatpush1.msra.mxu0 %v706
        %1053 = vmatprep.subr.mxu0 %v711
        %1054 = vmatpush1.msra.mxu0 %v710
        %1055 = vmatprep.subr.mxu0 %v715
        %1056 = vmatpush1.msra.mxu0 %v714
        %1057 = vmatprep.subr.mxu0 %v719
        %1058 = vmatpush1.msra.mxu0 %v718
        %1059 = vmatprep.subr.mxu0 %v723
        %1060 = vmatpush1.msra.mxu0 %v722
        %1061 = vmatprep.subr.mxu0 %v727
        %1062 = vmatpush1.msra.mxu0 %v726
        %1063 = vmatprep.subr.mxu0 %v731
        %1064 = vmatpush1.msra.mxu0 %v730
        %1065 = vmatprep.subr.mxu0 %v735
        %1066 = vmatpush1.msra.mxu0 %v734
        %1067 = vmatprep.subr.mxu0 %v739
        %1068 = vmatpush1.msra.mxu0 %v738
        %1069 = vmatprep.subr.mxu0 %v743
        %1070 = vmatpush1.msra.mxu0 %v742
        %1071 = vmatprep.subr.mxu0 %v747
        %1072 = vmatpush1.msra.mxu0 %v746
        %1073 = vmatprep.subr.mxu0 %v751
        %1074 = vmatpush1.msra.mxu0 %v750
        %1075 = vmatprep.subr.mxu0 %v755
        %1076 = vmatpush1.msra.mxu0 %v754
        %1077 = vmatprep.subr.mxu0 %v759
        %1078 = vmatpush1.msra.mxu0 %v758
        %1079 = vmatprep.subr.mxu0 %v763
        %1080 = vmatpush1.msra.mxu0 %v762
        %1081 = vmatprep.subr.mxu0 %v767
        %1082 = vmatpush1.msra.mxu0 %v766
        %1083 = vmatprep.subr.mxu0 %v771
        %1084 = vmatpush1.msra.mxu0 %v770
        %1085 = vmatprep.subr.mxu0 %v775
        %1086 = vmatpush1.msra.mxu0 %v774
        %1087 = vmatprep.subr.mxu0 %v779
        %1088 = vmatpush1.msra.mxu0 %v778
        %1089 = vmatprep.subr.mxu0 %v783
        %1090 = vmatpush1.msra.mxu0 %v782
        %1091 = vmatprep.subr.mxu0 %v787
        %1092 = vmatpush1.msra.mxu0 %v786
        %1093 = vmatprep.subr.mxu0 %v791
        %1094 = vmatpush1.msra.mxu0 %v790
        %1095 = vmatprep.subr.mxu0 %v795
        %1096 = vmatpush1.msra.mxu0 %v794
        %1097 = vmatprep.subr.mxu0 %v799
        %1098 = vmatpush1.msra.mxu0 %v798
        %1099 = vmatprep.subr.mxu0 %v803
        %1100 = vmatpush1.msra.mxu0 %v802
        %1101 = vmatprep.subr.mxu0 %v807
        %1102 = vmatpush1.msra.mxu0 %v806
        %1103 = vmatprep.subr.mxu0 %v811
        %1104 = vmatpush1.msra.mxu0 %v810
        %1105 = vmatprep.subr.mxu0 %v815
        %1106 = vmatpush1.msra.mxu0 %v814
        %1107 = vmatprep.subr.mxu0 %v819
        %1108 = vmatpush1.msra.mxu0 %v818
        %1109 = vmatprep.subr.mxu0 %v823
        %1110 = vmatpush1.msra.mxu0 %v822
        %1111 = vmatprep.mubr.f32.mxu0 %v555
        %1112 = vmatmul.mubr.f32.gmra.mrb[0].mxu0 %v552
        %v1113 = vpop.f32.mrb[0].mxu0
        %v1114 = vadd.f32 %v1043, %v1113
        %v1115 = vpop.f32.mrb[0].mxu0
        %v1116 = vadd.f32 %v1045, %v1115
        %1117 = vdwg.mxu0
        %1118 = vmatprep.subr.mxu0 %v827
        %1119 = vmatpush1.msra.mxu0 %v826
        %1120 = vmatprep.subr.mxu0 %v831
        %1121 = vmatpush1.msra.mxu0 %v830
        %1122 = vmatprep.subr.mxu0 %v835
        %1123 = vmatpush1.msra.mxu0 %v834
        %1124 = vmatprep.subr.mxu0 %v839
        %1125 = vmatpush1.msra.mxu0 %v838
        %1126 = vmatprep.subr.mxu0 %v843
        %1127 = vmatpush1.msra.mxu0 %v842
        %1128 = vmatprep.subr.mxu0 %v847
        %1129 = vmatpush1.msra.mxu0 %v846
        %1130 = vmatprep.subr.mxu0 %v851
        %1131 = vmatpush1.msra.mxu0 %v850
        %1132 = vmatprep.subr.mxu0 %v855
        %1133 = vmatpush1.msra.mxu0 %v854
        %1134 = vmatprep.subr.mxu0 %v859
        %1135 = vmatpush1.msra.mxu0 %v858
        %1136 = vmatprep.subr.mxu0 %v863
        %1137 = vmatpush1.msra.mxu0 %v862
        %1138 = vmatprep.subr.mxu0 %v867
        %1139 = vmatpush1.msra.mxu0 %v866
        %1140 = vmatprep.subr.mxu0 %v871
        %1141 = vmatpush1.msra.mxu0 %v870
        %1142 = vmatprep.subr.mxu0 %v875
        %1143 = vmatpush1.msra.mxu0 %v874
        %1144 = vmatprep.subr.mxu0 %v879
        %1145 = vmatpush1.msra.mxu0 %v878
        %1146 = vmatprep.subr.mxu0 %v883
        %1147 = vmatpush1.msra.mxu0 %v882
        %1148 = vmatprep.subr.mxu0 %v887
        %1149 = vmatpush1.msra.mxu0 %v886
        %1150 = vmatprep.subr.mxu0 %v891
        %1151 = vmatpush1.msra.mxu0 %v890
        %1152 = vmatprep.subr.mxu0 %v895
        %1153 = vmatpush1.msra.mxu0 %v894
        %1154 = vmatprep.subr.mxu0 %v899
        %1155 = vmatpush1.msra.mxu0 %v898
        %1156 = vmatprep.subr.mxu0 %v903
        %1157 = vmatpush1.msra.mxu0 %v902
        %1158 = vmatprep.subr.mxu0 %v907
        %1159 = vmatpush1.msra.mxu0 %v906
        %1160 = vmatprep.subr.mxu0 %v911
        %1161 = vmatpush1.msra.mxu0 %v910
        %1162 = vmatprep.subr.mxu0 %v915
        %1163 = vmatpush1.msra.mxu0 %v914
        %1164 = vmatprep.subr.mxu0 %v919
        %1165 = vmatpush1.msra.mxu0 %v918
        %1166 = vmatprep.subr.mxu0 %v923
        %1167 = vmatpush1.msra.mxu0 %v922
        %1168 = vmatprep.subr.mxu0 %v927
        %1169 = vmatpush1.msra.mxu0 %v926
        %1170 = vmatprep.subr.mxu0 %v931
        %1171 = vmatpush1.msra.mxu0 %v930
        %1172 = vmatprep.subr.mxu0 %v935
        %1173 = vmatpush1.msra.mxu0 %v934
        %1174 = vmatprep.subr.mxu0 %v939
        %1175 = vmatpush1.msra.mxu0 %v938
        %1176 = vmatprep.subr.mxu0 %v943
        %1177 = vmatpush1.msra.mxu0 %v942
        %1178 = vmatprep.subr.mxu0 %v947
        %1179 = vmatpush1.msra.mxu0 %v946
        %1180 = vmatprep.subr.mxu0 %v951
        %1181 = vmatpush1.msra.mxu0 %v950
        %1182 = vmatprep.mubr.f32.mxu0 %v567
        %1183 = vmatmul.mubr.f32.gmra.mrb[0].mxu0 %v564
        %v1184 = vpop.f32.mrb[0].mxu0
        %v1185 = vadd.f32 %v1114, %v1184
        %v1186 = vpop.f32.mrb[0].mxu0
        %v1187 = vadd.f32 %v1116, %v1186
        %1188 = vdwg.mxu0
        %1189 = vmatprep.subr.mxu0 %v573
        %1190 = vmatpush1.msra.mxu0 %v572
        %1191 = vmatprep.subr.mxu0 %v577
        %1192 = vmatpush1.msra.mxu0 %v576
        %1193 = vmatprep.subr.mxu0 %v581
        %1194 = vmatpush1.msra.mxu0 %v580
        %1195 = vmatprep.subr.mxu0 %v585
        %1196 = vmatpush1.msra.mxu0 %v584
        %1197 = vmatprep.subr.mxu0 %v589
        %1198 = vmatpush1.msra.mxu0 %v588
        %1199 = vmatprep.subr.mxu0 %v593
        %1200 = vmatpush1.msra.mxu0 %v592
        %1201 = vmatprep.subr.mxu0 %v597
        %1202 = vmatpush1.msra.mxu0 %v596
        %1203 = vmatprep.subr.mxu0 %v601
        %1204 = vmatpush1.msra.mxu0 %v600
        %1205 = vmatprep.subr.mxu0 %v605
        %1206 = vmatpush1.msra.mxu0 %v604
        %1207 = vmatprep.subr.mxu0 %v609
        %1208 = vmatpush1.msra.mxu0 %v608
        %1209 = vmatprep.subr.mxu0 %v613
        %1210 = vmatpush1.msra.mxu0 %v612
        %1211 = vmatprep.subr.mxu0 %v617
        %1212 = vmatpush1.msra.mxu0 %v616
        %1213 = vmatprep.subr.mxu0 %v621
        %1214 = vmatpush1.msra.mxu0 %v620
        %1215 = vmatprep.subr.mxu0 %v625
        %1216 = vmatpush1.msra.mxu0 %v624
        %1217 = vmatprep.subr.mxu0 %v629
        %1218 = vmatpush1.msra.mxu0 %v628
        %1219 = vmatprep.subr.mxu0 %v633
        %1220 = vmatpush1.msra.mxu0 %v632
        %1221 = vmatprep.subr.mxu0 %v637
        %1222 = vmatpush1.msra.mxu0 %v636
        %1223 = vmatprep.subr.mxu0 %v641
        %1224 = vmatpush1.msra.mxu0 %v640
        %1225 = vmatprep.subr.mxu0 %v645
        %1226 = vmatpush1.msra.mxu0 %v644
        %1227 = vmatprep.subr.mxu0 %v649
        %1228 = vmatpush1.msra.mxu0 %v648
        %1229 = vmatprep.subr.mxu0 %v653
        %1230 = vmatpush1.msra.mxu0 %v652
        %1231 = vmatprep.subr.mxu0 %v657
        %1232 = vmatpush1.msra.mxu0 %v656
        %1233 = vmatprep.subr.mxu0 %v661
        %1234 = vmatpush1.msra.mxu0 %v660
        %1235 = vmatprep.subr.mxu0 %v665
        %1236 = vmatpush1.msra.mxu0 %v664
        %1237 = vmatprep.subr.mxu0 %v669
        %1238 = vmatpush1.msra.mxu0 %v668
        %1239 = vmatprep.subr.mxu0 %v673
        %1240 = vmatpush1.msra.mxu0 %v672
        %1241 = vmatprep.subr.mxu0 %v677
        %1242 = vmatpush1.msra.mxu0 %v676
        %1243 = vmatprep.subr.mxu0 %v681
        %1244 = vmatpush1.msra.mxu0 %v680
        %1245 = vmatprep.subr.mxu0 %v685
        %1246 = vmatpush1.msra.mxu0 %v684
        %1247 = vmatprep.subr.mxu0 %v689
        %1248 = vmatpush1.msra.mxu0 %v688
        %1249 = vmatprep.subr.mxu0 %v693
        %1250 = vmatpush1.msra.mxu0 %v692
        %1251 = vmatprep.subr.mxu0 %v697
        %1252 = vmatpush1.msra.mxu0 %v696
        %1253 = vmatprep.mubr.f32.mxu0 %v536
        %1254 = vmatmul.mubr.f32.gmra.mrb[0].mxu0 %v535
        %v1255 = vpop.f32.mrb[0].mxu0
        %v1256 = vadd.f32 %v967, %v1255
        %v1257 = vpop.f32.mrb[0].mxu0
        %v1258 = vadd.f32 %v971, %v1257
        %1259 = vdwg.mxu0
        %1260 = vmatprep.subr.mxu0 %v701
        %1261 = vmatpush1.msra.mxu0 %v700
        %1262 = vmatprep.subr.mxu0 %v705
        %1263 = vmatpush1.msra.mxu0 %v704
        %1264 = vmatprep.subr.mxu0 %v709
        %1265 = vmatpush1.msra.mxu0 %v708
        %1266 = vmatprep.subr.mxu0 %v713
        %1267 = vmatpush1.msra.mxu0 %v712
        %1268 = vmatprep.subr.mxu0 %v717
        %1269 = vmatpush1.msra.mxu0 %v716
        %1270 = vmatprep.subr.mxu0 %v721
        %1271 = vmatpush1.msra.mxu0 %v720
        %1272 = vmatprep.subr.mxu0 %v725
        %1273 = vmatpush1.msra.mxu0 %v724
        %1274 = vmatprep.subr.mxu0 %v729
        %1275 = vmatpush1.msra.mxu0 %v728
        %1276 = vmatprep.subr.mxu0 %v733
        %1277 = vmatpush1.msra.mxu0 %v732
        %1278 = vmatprep.subr.mxu0 %v737
        %1279 = vmatpush1.msra.mxu0 %v736
        %1280 = vmatprep.subr.mxu0 %v741
        %1281 = vmatpush1.msra.mxu0 %v740
        %1282 = vmatprep.subr.mxu0 %v745
        %1283 = vmatpush1.msra.mxu0 %v744
        %1284 = vmatprep.subr.mxu0 %v749
        %1285 = vmatpush1.msra.mxu0 %v748
        %1286 = vmatprep.subr.mxu0 %v753
        %1287 = vmatpush1.msra.mxu0 %v752
        %1288 = vmatprep.subr.mxu0 %v757
        %1289 = vmatpush1.msra.mxu0 %v756
        %1290 = vmatprep.subr.mxu0 %v761
        %1291 = vmatpush1.msra.mxu0 %v760
        %1292 = vmatprep.subr.mxu0 %v765
        %1293 = vmatpush1.msra.mxu0 %v764
        %1294 = vmatprep.subr.mxu0 %v769
        %1295 = vmatpush1.msra.mxu0 %v768
        %1296 = vmatprep.subr.mxu0 %v773
        %1297 = vmatpush1.msra.mxu0 %v772
        %1298 = vmatprep.subr.mxu0 %v777
        %1299 = vmatpush1.msra.mxu0 %v776
        %1300 = vmatprep.subr.mxu0 %v781
        %1301 = vmatpush1.msra.mxu0 %v780
        %1302 = vmatprep.subr.mxu0 %v785
        %1303 = vmatpush1.msra.mxu0 %v784
        %1304 = vmatprep.subr.mxu0 %v789
        %1305 = vmatpush1.msra.mxu0 %v788
        %1306 = vmatprep.subr.mxu0 %v793
        %1307 = vmatpush1.msra.mxu0 %v792
        %1308 = vmatprep.subr.mxu0 %v797
        %1309 = vmatpush1.msra.mxu0 %v796
        %1310 = vmatprep.subr.mxu0 %v801
        %1311 = vmatpush1.msra.mxu0 %v800
        %1312 = vmatprep.subr.mxu0 %v805
        %1313 = vmatpush1.msra.mxu0 %v804
        %1314 = vmatprep.subr.mxu0 %v809
        %1315 = vmatpush1.msra.mxu0 %v808
        %1316 = vmatprep.subr.mxu0 %v813
        %1317 = vmatpush1.msra.mxu0 %v812
        %1318 = vmatprep.subr.mxu0 %v817
        %1319 = vmatpush1.msra.mxu0 %v816
        %1320 = vmatprep.subr.mxu0 %v821
        %1321 = vmatpush1.msra.mxu0 %v820
        %1322 = vmatprep.subr.mxu0 %v825
        %1323 = vmatpush1.msra.mxu0 %v824
        %1324 = vmatprep.mubr.f32.mxu0 %v555
        %1325 = vmatmul.mubr.f32.gmra.mrb[0].mxu0 %v552
        %v1326 = vpop.f32.mrb[0].mxu0
        %v1327 = vadd.f32 %v1256, %v1326
        %v1328 = vpop.f32.mrb[0].mxu0
        %v1329 = vadd.f32 %v1258, %v1328
        %1330 = vdwg.mxu0
        %1331 = vmatprep.subr.mxu0 %v829
        %1332 = vmatpush1.msra.mxu0 %v828
        %1333 = vmatprep.subr.mxu0 %v833
        %1334 = vmatpush1.msra.mxu0 %v832
        %1335 = vmatprep.subr.mxu0 %v837
        %1336 = vmatpush1.msra.mxu0 %v836
        %1337 = vmatprep.subr.mxu0 %v841
        %1338 = vmatpush1.msra.mxu0 %v840
        %1339 = vmatprep.subr.mxu0 %v845
        %1340 = vmatpush1.msra.mxu0 %v844
        %1341 = vmatprep.subr.mxu0 %v849
        %1342 = vmatpush1.msra.mxu0 %v848
        %1343 = vmatprep.subr.mxu0 %v853
        %1344 = vmatpush1.msra.mxu0 %v852
        %1345 = vmatprep.subr.mxu0 %v857
        %1346 = vmatpush1.msra.mxu0 %v856
        %1347 = vmatprep.subr.mxu0 %v861
        %1348 = vmatpush1.msra.mxu0 %v860
        %1349 = vmatprep.subr.mxu0 %v865
        %1350 = vmatpush1.msra.mxu0 %v864
        %1351 = vmatprep.subr.mxu0 %v869
        %1352 = vmatpush1.msra.mxu0 %v868
        %1353 = vmatprep.subr.mxu0 %v873
        %1354 = vmatpush1.msra.mxu0 %v872
        %1355 = vmatprep.subr.mxu0 %v877
        %1356 = vmatpush1.msra.mxu0 %v876
        %1357 = vmatprep.subr.mxu0 %v881
        %1358 = vmatpush1.msra.mxu0 %v880
        %1359 = vmatprep.subr.mxu0 %v885
        %1360 = vmatpush1.msra.mxu0 %v884
        %1361 = vmatprep.subr.mxu0 %v889
        %1362 = vmatpush1.msra.mxu0 %v888
        %1363 = vmatprep.subr.mxu0 %v893
        %1364 = vmatpush1.msra.mxu0 %v892
        %1365 = vmatprep.subr.mxu0 %v897
        %1366 = vmatpush1.msra.mxu0 %v896
        %1367 = vmatprep.subr.mxu0 %v901
        %1368 = vmatpush1.msra.mxu0 %v900
        %1369 = vmatprep.subr.mxu0 %v905
        %1370 = vmatpush1.msra.mxu0 %v904
        %1371 = vmatprep.subr.mxu0 %v909
        %1372 = vmatpush1.msra.mxu0 %v908
        %1373 = vmatprep.subr.mxu0 %v913
        %1374 = vmatpush1.msra.mxu0 %v912
        %1375 = vmatprep.subr.mxu0 %v917
        %1376 = vmatpush1.msra.mxu0 %v916
        %1377 = vmatprep.subr.mxu0 %v921
        %1378 = vmatpush1.msra.mxu0 %v920
        %1379 = vmatprep.subr.mxu0 %v925
        %1380 = vmatpush1.msra.mxu0 %v924
        %1381 = vmatprep.subr.mxu0 %v929
        %1382 = vmatpush1.msra.mxu0 %v928
        %1383 = vmatprep.subr.mxu0 %v933
        %1384 = vmatpush1.msra.mxu0 %v932
        %1385 = vmatprep.subr.mxu0 %v937
        %1386 = vmatpush1.msra.mxu0 %v936
        %1387 = vmatprep.subr.mxu0 %v941
        %1388 = vmatpush1.msra.mxu0 %v940
        %1389 = vmatprep.subr.mxu0 %v945
        %1390 = vmatpush1.msra.mxu0 %v944
        %1391 = vmatprep.subr.mxu0 %v949
        %1392 = vmatpush1.msra.mxu0 %v948
        %1393 = vmatprep.subr.mxu0 %v953
        %1394 = vmatpush1.msra.mxu0 %v952
        %1395 = vmatprep.mubr.f32.mxu0 %v567
        %1396 = vmatmul.mubr.f32.gmra.mrb[0].mxu0 %v564
        %v1397 = vpop.f32.mrb[0].mxu0
        %v1398 = vadd.f32 %v1327, %v1397
        %v1399 = vpop.f32.mrb[0].mxu0
        %v1400 = vadd.f32 %v1329, %v1399
        %1401 = vdwg.mxu0
        %v1402 = vmax.f32 %v1185, 0.0
        %v1403 = vmax.f32 %v1187, 0.0
        %v1404 = vmax.f32 %v1398, 0.0
        %v1405 = vmax.f32 %v1400, 0.0
        %v1406 = vrot.slane %v1402, 4
        %v1407 = vadd.f32 %v1402, %v1406
        %v1408 = vrot.slane %v1407, 2
        %v1409 = vadd.f32 %v1407, %v1408
        %v1410 = vrot.slane %v1409, 1
        %v1411 = vadd.f32 %v1409, %v1410
        %v1412 = vrot.slane %v1403, 4
        %v1413 = vadd.f32 %v1403, %v1412
        %v1414 = vrot.slane %v1413, 2
        %v1415 = vadd.f32 %v1413, %v1414
        %v1416 = vrot.slane %v1415, 1
        %v1417 = vadd.f32 %v1415, %v1416
        %v1418 = vrot.slane %v1404, 4
        %v1419 = vadd.f32 %v1404, %v1418
        %v1420 = vrot.slane %v1419, 2
        %v1421 = vadd.f32 %v1419, %v1420
        %v1422 = vrot.slane %v1421, 1
        %v1423 = vadd.f32 %v1421, %v1422
        %v1424 = vrot.slane %v1405, 4
        %v1425 = vadd.f32 %v1405, %v1424
        %v1426 = vrot.slane %v1425, 2
        %v1427 = vadd.f32 %v1425, %v1426
        %v1428 = vrot.slane %v1427, 1
        %v1429 = vadd.f32 %v1427, %v1428
        %v1430 = vld [vmem:[%s5] sm:$0xff]
        %v1431 = vld [vmem:[%s5 + $0x8] sm:$0xff]
        %v1432 = vld [vmem:[%s5 + $0x10] sm:$0xff]
        %v1433 = vld [vmem:[%s5 + $0x18] sm:$0xff]
        %v1434 = vld [vmem:[%s5 + $0x20] sm:$0xff]
        %v1435 = vld [vmem:[%s5 + $0x28] sm:$0xff]
        %v1436 = vld [vmem:[%s5 + $0x30] sm:$0xff]
        %v1437 = vld [vmem:[%s5 + $0x38] sm:$0xff]
        %v1438 = vld [vmem:[%s5 + $0x40] sm:$0xff]
        %v1439 = vld [vmem:[%s5 + $0x48] sm:$0xff]
        %v1440 = vld [vmem:[%s5 + $0x50] sm:$0xff]
        %v1441 = vld [vmem:[%s5 + $0x58] sm:$0xff]
        %v1442 = vld [vmem:[%s5 + $0x60] sm:$0xff]
        %v1443 = vld [vmem:[%s5 + $0x68] sm:$0xff]
        %v1444 = vld [vmem:[%s5 + $0x70] sm:$0xff]
        %v1445 = vld [vmem:[%s5 + $0x78] sm:$0xff]
        %v1446 = vld [vmem:[%s5 + $0x80] sm:$0xff]
        %v1447 = vld [vmem:[%s5 + $0x88] sm:$0xff]
        %v1448 = vld [vmem:[%s5 + $0x90] sm:$0xff]
        %v1449 = vld [vmem:[%s5 + $0x98] sm:$0xff]
        %v1450 = vld [vmem:[%s5 + $0xa0] sm:$0xff]
        %v1451 = vld [vmem:[%s5 + $0xa8] sm:$0xff]
        %v1452 = vld [vmem:[%s5 + $0xb0] sm:$0xff]
        %v1453 = vld [vmem:[%s5 + $0xb8] sm:$0xff]
        %v1454 = vld [vmem:[%s5 + $0xc0] sm:$0xff]
        %v1455 = vld [vmem:[%s5 + $0xc8] sm:$0xff]
        %v1456 = vld [vmem:[%s5 + $0xd0] sm:$0xff]
        %v1457 = vld [vmem:[%s5 + $0xd8] sm:$0xff]
        %v1458 = vld [vmem:[%s5 + $0xe0] sm:$0xff]
        %v1459 = vld [vmem:[%s5 + $0xe8] sm:$0xff]
        %v1460 = vld [vmem:[%s5 + $0xf0] sm:$0xff]
        %v1461 = vld [vmem:[%s5 + $0xf8] sm:$0xff]
        %v1462 = vld [vmem:[%s5 + $0x100] sm:$0xff]
        %v1463 = vld [vmem:[%s5 + $0x108] sm:$0xff]
        %v1464 = vld [vmem:[%s5 + $0x110] sm:$0xff]
        %v1465 = vld [vmem:[%s5 + $0x118] sm:$0xff]
        %v1466 = vld [vmem:[%s5 + $0x120] sm:$0xff]
        %v1467 = vld [vmem:[%s5 + $0x128] sm:$0xff]
        %v1468 = vld [vmem:[%s5 + $0x130] sm:$0xff]
        %v1469 = vld [vmem:[%s5 + $0x138] sm:$0xff]
        %v1470 = vld [vmem:[%s5 + $0x140] sm:$0xff]
        %v1471 = vld [vmem:[%s5 + $0x148] sm:$0xff]
        %v1472 = vld [vmem:[%s5 + $0x150] sm:$0xff]
        %v1473 = vld [vmem:[%s5 + $0x158] sm:$0xff]
        %v1474 = vld [vmem:[%s5 + $0x160] sm:$0xff]
        %v1475 = vld [vmem:[%s5 + $0x168] sm:$0xff]
        %v1476 = vld [vmem:[%s5 + $0x170] sm:$0xff]
        %v1477 = vld [vmem:[%s5 + $0x178] sm:$0xff]
        %v1478 = vld [vmem:[%s5 + $0x180] sm:$0xff]
        %v1479 = vld [vmem:[%s5 + $0x188] sm:$0xff]
        %v1480 = vld [vmem:[%s5 + $0x190] sm:$0xff]
        %v1481 = vld [vmem:[%s5 + $0x198] sm:$0xff]
        %v1482 = vld [vmem:[%s5 + $0x1a0] sm:$0xff]
        %v1483 = vld [vmem:[%s5 + $0x1a8] sm:$0xff]
        %v1484 = vld [vmem:[%s5 + $0x1b0] sm:$0xff]
        %v1485 = vld [vmem:[%s5 + $0x1b8] sm:$0xff]
        %v1486 = vld [vmem:[%s5 + $0x1c0] sm:$0xff]
        %v1487 = vld [vmem:[%s5 + $0x1c8] sm:$0xff]
        %v1488 = vld [vmem:[%s5 + $0x1d0] sm:$0xff]
        %v1489 = vld [vmem:[%s5 + $0x1d8] sm:$0xff]
        %v1490 = vld [vmem:[%s5 + $0x1e0] sm:$0xff]
        %v1491 = vld [vmem:[%s5 + $0x1e8] sm:$0xff]
        %v1492 = vld [vmem:[%s5 + $0x1f0] sm:$0xff]
        %v1493 = vld [vmem:[%s5 + $0x1f8] sm:$0xff]
        %v1494 = vld [vmem:[%s6] sm:$0x1]
        %1495 = vmatprep.subr.mxu0 0.0
        %1496 = vmatpush1.msra.mxu0 %v1430
        %1497 = vmatprep.subr.mxu0 0.0
        %1498 = vmatpush1.msra.mxu0 %v1431
        %1499 = vmatprep.subr.mxu0 0.0
        %1500 = vmatpush1.msra.mxu0 %v1432
        %1501 = vmatprep.subr.mxu0 0.0
        %1502 = vmatpush1.msra.mxu0 %v1433
        %1503 = vmatprep.subr.mxu0 0.0
        %1504 = vmatpush1.msra.mxu0 %v1434
        %1505 = vmatprep.subr.mxu0 0.0
        %1506 = vmatpush1.msra.mxu0 %v1435
        %1507 = vmatprep.subr.mxu0 0.0
        %1508 = vmatpush1.msra.mxu0 %v1436
        %1509 = vmatprep.subr.mxu0 0.0
        %1510 = vmatpush1.msra.mxu0 %v1437
        %1511 = vmatprep.subr.mxu0 0.0
        %1512 = vmatpush1.msra.mxu0 %v1438
        %1513 = vmatprep.subr.mxu0 0.0
        %1514 = vmatpush1.msra.mxu0 %v1439
        %1515 = vmatprep.subr.mxu0 0.0
        %1516 = vmatpush1.msra.mxu0 %v1440
        %1517 = vmatprep.subr.mxu0 0.0
        %1518 = vmatpush1.msra.mxu0 %v1441
        %1519 = vmatprep.subr.mxu0 0.0
        %1520 = vmatpush1.msra.mxu0 %v1442
        %1521 = vmatprep.subr.mxu0 0.0
        %1522 = vmatpush1.msra.mxu0 %v1443
        %1523 = vmatprep.subr.mxu0 0.0
        %1524 = vmatpush1.msra.mxu0 %v1444
        %1525 = vmatprep.subr.mxu0 0.0
        %1526 = vmatpush1.msra.mxu0 %v1445
        %1527 = vmatprep.subr.mxu0 0.0
        %1528 = vmatpush1.msra.mxu0 %v1446
        %1529 = vmatprep.subr.mxu0 0.0
        %1530 = vmatpush1.msra.mxu0 %v1447
        %1531 = vmatprep.subr.mxu0 0.0
        %1532 = vmatpush1.msra.mxu0 %v1448
        %1533 = vmatprep.subr.mxu0 0.0
        %1534 = vmatpush1.msra.mxu0 %v1449
        %1535 = vmatprep.subr.mxu0 0.0
        %1536 = vmatpush1.msra.mxu0 %v1450
        %1537 = vmatprep.subr.mxu0 0.0
        %1538 = vmatpush1.msra.mxu0 %v1451
        %1539 = vmatprep.subr.mxu0 0.0
        %1540 = vmatpush1.msra.mxu0 %v1452
        %1541 = vmatprep.subr.mxu0 0.0
        %1542 = vmatpush1.msra.mxu0 %v1453
        %1543 = vmatprep.subr.mxu0 0.0
        %1544 = vmatpush1.msra.mxu0 %v1454
        %1545 = vmatprep.subr.mxu0 0.0
        %1546 = vmatpush1.msra.mxu0 %v1455
        %1547 = vmatprep.subr.mxu0 0.0
        %1548 = vmatpush1.msra.mxu0 %v1456
        %1549 = vmatprep.subr.mxu0 0.0
        %1550 = vmatpush1.msra.mxu0 %v1457
        %1551 = vmatprep.subr.mxu0 0.0
        %1552 = vmatpush1.msra.mxu0 %v1458
        %1553 = vmatprep.subr.mxu0 0.0
        %1554 = vmatpush1.msra.mxu0 %v1459
        %1555 = vmatprep.subr.mxu0 0.0
        %1556 = vmatpush1.msra.mxu0 %v1460
        %1557 = vmatprep.subr.mxu0 0.0
        %1558 = vmatpush1.msra.mxu0 %v1461
        %1559 = vmatprep.mubr.f32.mxu0 %v1417
        %1560 = vmatmul.mubr.f32.gmra.mrb[0].mxu0 %v1411
        %v1561 = vpop.f32.mrb[0].mxu0
        %v1562 = vadd.f32 %v1494, %v1561
        %v1563 = vpop.f32.mrb[0].mxu0
        %1564 = vdwg.mxu0
        %1565 = vmatprep.subr.mxu0 0.0
        %1566 = vmatpush1.msra.mxu0 %v1462
        %1567 = vmatprep.subr.mxu0 0.0
        %1568 = vmatpush1.msra.mxu0 %v1463
        %1569 = vmatprep.subr.mxu0 0.0
        %1570 = vmatpush1.msra.mxu0 %v1464
        %1571 = vmatprep.subr.mxu0 0.0
        %1572 = vmatpush1.msra.mxu0 %v1465
        %1573 = vmatprep.subr.mxu0 0.0
        %1574 = vmatpush1.msra.mxu0 %v1466
        %1575 = vmatprep.subr.mxu0 0.0
        %1576 = vmatpush1.msra.mxu0 %v1467
        %1577 = vmatprep.subr.mxu0 0.0
        %1578 = vmatpush1.msra.mxu0 %v1468
        %1579 = vmatprep.subr.mxu0 0.0
        %1580 = vmatpush1.msra.mxu0 %v1469
        %1581 = vmatprep.subr.mxu0 0.0
        %1582 = vmatpush1.msra.mxu0 %v1470
        %1583 = vmatprep.subr.mxu0 0.0
        %1584 = vmatpush1.msra.mxu0 %v1471
        %1585 = vmatprep.subr.mxu0 0.0
        %1586 = vmatpush1.msra.mxu0 %v1472
        %1587 = vmatprep.subr.mxu0 0.0
        %1588 = vmatpush1.msra.mxu0 %v1473
        %1589 = vmatprep.subr.mxu0 0.0
        %1590 = vmatpush1.msra.mxu0 %v1474
        %1591 = vmatprep.subr.mxu0 0.0
        %1592 = vmatpush1.msra.mxu0 %v1475
        %1593 = vmatprep.subr.mxu0 0.0
        %1594 = vmatpush1.msra.mxu0 %v1476
        %1595 = vmatprep.subr.mxu0 0.0
        %1596 = vmatpush1.msra.mxu0 %v1477
        %1597 = vmatprep.subr.mxu0 0.0
        %1598 = vmatpush1.msra.mxu0 %v1478
        %1599 = vmatprep.subr.mxu0 0.0
        %1600 = vmatpush1.msra.mxu0 %v1479
        %1601 = vmatprep.subr.mxu0 0.0
        %1602 = vmatpush1.msra.mxu0 %v1480
        %1603 = vmatprep.subr.mxu0 0.0
        %1604 = vmatpush1.msra.mxu0 %v1481
        %1605 = vmatprep.subr.mxu0 0.0
        %1606 = vmatpush1.msra.mxu0 %v1482
        %1607 = vmatprep.subr.mxu0 0.0
        %1608 = vmatpush1.msra.mxu0 %v1483
        %1609 = vmatprep.subr.mxu0 0.0
        %1610 = vmatpush1.msra.mxu0 %v1484
        %1611 = vmatprep.subr.mxu0 0.0
        %1612 = vmatpush1.msra.mxu0 %v1485
        %1613 = vmatprep.subr.mxu0 0.0
        %1614 = vmatpush1.msra.mxu0 %v1486
        %1615 = vmatprep.subr.mxu0 0.0
        %1616 = vmatpush1.msra.mxu0 %v1487
        %1617 = vmatprep.subr.mxu0 0.0
        %1618 = vmatpush1.msra.mxu0 %v1488
        %1619 = vmatprep.subr.mxu0 0.0
        %1620 = vmatpush1.msra.mxu0 %v1489
        %1621 = vmatprep.subr.mxu0 0.0
        %1622 = vmatpush1.msra.mxu0 %v1490
        %1623 = vmatprep.subr.mxu0 0.0
        %1624 = vmatpush1.msra.mxu0 %v1491
        %1625 = vmatprep.subr.mxu0 0.0
        %1626 = vmatpush1.msra.mxu0 %v1492
        %1627 = vmatprep.subr.mxu0 0.0
        %1628 = vmatpush1.msra.mxu0 %v1493
        %1629 = vmatprep.mubr.f32.mxu0 %v1429
        %1630 = vmatmul.mubr.f32.gmra.mrb[0].mxu0 %v1423
        %v1631 = vpop.f32.mrb[0].mxu0
        %v1632 = vadd.f32 %v1562, %v1631
        %v1633 = vpop.f32.mrb[0].mxu0
        %1634 = vdwg.mxu0
        %1635 = vst [vmem:[%s270] sm:$0x1] %v1632
        %s1636 = sand.u32 %s181, 1
        %s1637 = scalar_lea.sflag [#allocation4], %s1636
        %s1638 = sand.u32 %s181, 1
        %s1639 = scalar_lea.vmem [#allocation3], %s1638
        // Predicated region
        $region49: #{simple_cnn_forward.1} parent=47 // pred_check
          %p1640 = pneg %p191
        $region50: #{simple_cnn_forward.1} parent=47 // pred_check_branch
          %1642 = sbr.rel (%p1640) target = $region52
        $region51: #{simple_cnn_forward.1} parent=47 // pred_region
          %s1644 = ssub.s32 16, 16
          %1645 = vsyncadd %s1637, %s1644
          %s1646 = smul.addr %s21, 16
          %s1647 = scalar_lea.hbm %s7, %s1646
          %s1649 = sshll.u32 %s1639, 4
          %s1650 = int_to_ptr.vmem [resolvable:$true] %s1649
          %1652 = dma.vmem_to_hbm [thread:$0]  %s1650, 16, %s1647, %s1637
        $region52: #{simple_cnn_forward.1} parent=47 // pred_fallthru
          _
      $region48: #{simple_cnn_forward.1} parent=5 // pred_fallthru
        _
      %p1653 = scmp.le.s32.totalorder 2, %s16
      // Predicated region
      $region53: #{simple_cnn_forward.1} parent=5 // pred_check
        %p1654 = pneg %p1653
      $region54: #{simple_cnn_forward.1} parent=5 // pred_check_branch
        %1656 = sbr.rel (%p1654) target = $region56
      $region55: #{simple_cnn_forward.1} parent=5 // pred_region
        %s1657 = ssub.s32 %s16, 2
        // Predicated region
        $region57: #{simple_cnn_forward.1} parent=55 // pred_check
          %p1658 = pneg %p197
        $region58: #{simple_cnn_forward.1} parent=55 // pred_check_branch
          %1660 = sbr.rel (%p1658) target = $region60
        $region59: #{simple_cnn_forward.1} parent=55 // pred_region
          %s1661 = sand.u32 %s182, 1
          %s1662 = scalar_lea.sflag [#allocation4], %s1661
          %s1663 = sand.u32 %s182, 1
          %s1664 = scalar_lea.vmem [#allocation3], %s1663
          %1665 = dma.done %s1662, 16
        $region60: #{simple_cnn_forward.1} parent=55 // pred_fallthru
          _
      $region56: #{simple_cnn_forward.1} parent=5 // pred_fallthru
        _
    $region6: #{simple_cnn_forward.1} parent=1 // loop_footer
      %s20 = sadd.s32 1, %s16
    $region7: #{simple_cnn_forward.1} parent=1 // loop_footer_branch
      %15 = sbr.rel target = $region3
    $region8: #{simple_cnn_forward.1} parent=1 // loop_exit
      _
    %1666 = vsyncpa [#allocation4], 1
    %s1667 = scalar_lea.sflag [#allocation4], 1
    %1668 = vsyncpa %s1667, 1

</llo_original>
